<compile_context>
chip_gen: v6e
topology: v6e:2x2x1
jax: 0.10.0
libtpu: 0.0.40
codegen_flags: <defaults>
</compile_context>

<pallas_src>
import math
import functools

import jax
import jax.numpy as jnp
from jax.experimental import pallas as pl
from jax.experimental.pallas import tpu as pltpu


def _encoder_layer_kernel(x_ref, mask_ref, mat_ref,
                          wq_ref, wk_ref, wv_ref, fc_ref,
                          g1_ref, b1_ref, g2_ref, b2_ref,
                          out_ref, ctx_ref, *, n_heads, d_k, d_v):
    Bt, N, D = x_ref.shape
    H = n_heads

    x = x_ref[...]                                   # (Bt, N, D) f32
    x2d = x.reshape(Bt * N, D)
    x2d_bf = x2d.astype(jnp.bfloat16)

    # Wide fused projections: (Bt*N, D) @ (D, H*d_k) — bf16 inputs, f32 accum.
    # 1/sqrt(d_k) is already folded into W_Q in the wrapper.
    q = jnp.dot(x2d_bf, wq_ref[...], preferred_element_type=jnp.float32)
    k = jnp.dot(x2d_bf, wk_ref[...], preferred_element_type=jnp.float32)
    v = jnp.dot(x2d_bf, wv_ref[...], preferred_element_type=jnp.float32)

    mat = mat_ref[...]                               # (Bt, H, N, N) bf16
    masked = mask_ref[...] > 0.0                     # mask compare done once

    # Per-head attention, heads statically unrolled (H is small).  The per-head
    # score/context matmuls contract over only d_k/d_v, so batching the head
    # dim into one einsum would not raise MXU utilization here.
    for h in range(H):
        q_h = q[:, h * d_k:(h + 1) * d_k].reshape(Bt, N, d_k).astype(jnp.bfloat16)
        k_h = k[:, h * d_k:(h + 1) * d_k].reshape(Bt, N, d_k).astype(jnp.bfloat16)
        v_h = v[:, h * d_v:(h + 1) * d_v].reshape(Bt, N, d_v).astype(jnp.bfloat16)

        s = jnp.einsum('bqd,bkd->bqk', q_h, k_h,
                       preferred_element_type=jnp.float32)        # (Bt, N, N)
        s = s * mat[:, h].astype(jnp.float32)                     # matrix weighting
        s = jnp.where(masked, -1e9, s)                            # masked_fill_

        m = jnp.max(s, axis=-1, keepdims=True)
        e = jnp.exp(s - m)
        attn = e / jnp.sum(e, axis=-1, keepdims=True)             # exact softmax (f32)

        ctx_h = jnp.einsum('bqk,bkd->bqd', attn.astype(jnp.bfloat16), v_h,
                           preferred_element_type=jnp.float32)    # (Bt, N, d_v)
        ctx_ref[:, h * d_v:(h + 1) * d_v] = ctx_h.reshape(Bt * N, d_v)

    # Single output projection over all heads: (Bt*N, H*d_v) @ (H*d_v, D).
    out = jnp.dot(ctx_ref[...].astype(jnp.bfloat16), fc_ref[...],
                  preferred_element_type=jnp.float32)             # (Bt*N, D)

    # LayerNorm inside MultiHeadAttention (dropout = identity in eval mode).
    mu1 = jnp.mean(out, axis=-1, keepdims=True)
    var1 = jnp.mean(out * out, axis=-1, keepdims=True) - mu1 * mu1
    nm1 = (out - mu1) * jax.lax.rsqrt(var1 + 1e-5) * g1_ref[...] + b1_ref[...]

    # Residual + EncoderLayer LayerNorm.
    y = nm1 + x2d
    mu2 = jnp.mean(y, axis=-1, keepdims=True)
    var2 = jnp.mean(y * y, axis=-1, keepdims=True) - mu2 * mu2
    out_ref[...] = ((y - mu2) * jax.lax.rsqrt(var2 + 1e-5)
                    * g2_ref[...] + b2_ref[...]).reshape(Bt, N, D)


def _per_step_vmem_bytes(block_b, N, D, H, d_k, d_v):
    f32, bf16 = 4, 2
    streamed = (block_b * N * D * f32            # x block
                + block_b * N * N * bf16         # mask block
                + block_b * H * N * N * bf16     # matrix block
                + block_b * N * D * f32)         # out block
    resident = ((3 * D * H * d_k + H * d_v * D) * bf16   # weights (constant index)
                + 4 * D * f32                            # LN params
                + block_b * N * H * d_v * f32)           # ctx scratch
    return 2 * streamed + 2 * resident          # x2: double-buffered stages


def _pick_block_b(B, N, H, D, d_k, d_v, target_rows=256, vmem_cap=44 << 20):
    """Largest divisor of B with ~target_rows rows per step that fits VMEM.
    No '>=2 blocks' constraint: that only helps v7x with a sharded batch axis."""
    best = 1
    for cand in range(1, B + 1):
        if B % cand != 0:
            continue
        if cand * N <= target_rows and \
                _per_step_vmem_bytes(cand, N, D, H, d_k, d_v) <= vmem_cap:
            best = cand
    return best


def encoder_layer(enc_inputs, attn_mask, matrix, params,
                  *, n_heads, d_k, d_v, block_b=None):
    B, N, D = enc_inputs.shape
    H = n_heads
    if block_b is None:
        block_b = _pick_block_b(B, N, H, D, d_k, d_v)
    assert B % block_b == 0

    # Weight prep (one-time, trace-level): fold 1/sqrt(d_k) into W_Q, cast to
    # bf16 for the MXU.  Streams (matrix, mask) also go in as bf16.
    inv_sqrt_dk = 1.0 / math.sqrt(d_k)
    wq = (params["wq_t"] * inv_sqrt_dk).astype(jnp.bfloat16)   # (D, H*d_k)
    wk = params["wk_t"].astype(jnp.bfloat16)                   # (D, H*d_k)
    wv = params["wv_t"].astype(jnp.bfloat16)                   # (D, H*d_v)
    fc = params["fc_t"].astype(jnp.bfloat16)                   # (H*d_v, D)
    mat_bf = matrix.astype(jnp.bfloat16)
    mask_bf = attn_mask.astype(jnp.bfloat16)                   # 0/1 flag, exact

    # VMEM budget from the real footprint, capped below v7x's 64 MiB physical.
    per_step = _per_step_vmem_bytes(block_b, N, D, H, d_k, d_v)
    vmem_limit = min(max(int(1.5 * per_step) + (8 << 20), 32 << 20), 48 << 20)

    kernel = functools.partial(_encoder_layer_kernel,
                               n_heads=H, d_k=d_k, d_v=d_v)
    grid = (B // block_b,)

    return pl.pallas_call(
        kernel,
        out_shape=jax.ShapeDtypeStruct((B, N, D), jnp.float32),
        grid_spec=pltpu.PrefetchScalarGridSpec(
            num_scalar_prefetch=0,
            grid=grid,
            in_specs=[
                pl.BlockSpec((block_b, N, D), lambda b: (b, 0, 0)),        # x
                pl.BlockSpec((block_b, N, N), lambda b: (b, 0, 0)),        # mask
                pl.BlockSpec((block_b, H, N, N), lambda b: (b, 0, 0, 0)),  # matrix
                pl.BlockSpec((D, H * d_k), lambda b: (0, 0)),              # W_Q (scaled)
                pl.BlockSpec((D, H * d_k), lambda b: (0, 0)),              # W_K
                pl.BlockSpec((D, H * d_v), lambda b: (0, 0)),              # W_V
                pl.BlockSpec((H * d_v, D), lambda b: (0, 0)),              # fc
                pl.BlockSpec((1, D), lambda b: (0, 0)),                    # ln1 gamma
                pl.BlockSpec((1, D), lambda b: (0, 0)),                    # ln1 beta
                pl.BlockSpec((1, D), lambda b: (0, 0)),                    # ln2 gamma
                pl.BlockSpec((1, D), lambda b: (0, 0)),                    # ln2 beta
            ],
            out_specs=pl.BlockSpec((block_b, N, D), lambda b: (b, 0, 0)),
            scratch_shapes=[pltpu.VMEM((block_b * N, H * d_v), jnp.float32)],
        ),
        compiler_params=pltpu.CompilerParams(
            dimension_semantics=("parallel",),
            vmem_limit_bytes=vmem_limit,
        ),
    )(enc_inputs, mask_bf, mat_bf, wq, wk, wv, fc,
      params["g1"], params["b1"], params["g2"], params["b2"])


def _reference(enc_inputs, attn_mask, matrix, params, *, n_heads, d_k, d_v):
    """Pure-JAX f32 mirror of the PyTorch forward (eval mode)."""
    B, N, D = enc_inputs.shape
    Q = (enc_inputs @ params["wq_t"]).reshape(B, N, n_heads, d_k).transpose(0, 2, 1, 3)
    K = (enc_inputs @ params["wk_t"]).reshape(B, N, n_heads, d_k).transpose(0, 2, 1, 3)
    V = (enc_inputs @ params["wv_t"]).reshape(B, N, n_heads, d_v).transpose(0, 2, 1, 3)
    scores = jnp.einsum("bhqd,bhkd->bhqk", Q, K) / math.sqrt(d_k)
    scores = scores * matrix
    scores = jnp.where(attn_mask[:, None, :, :] > 0, -1e9, scores)
    attn = jax.nn.softmax(scores, axis=-1)
    ctx = jnp.einsum("bhqk,bhkd->bhqd", attn, V).transpose(0, 2, 1, 3).reshape(B, N, n_heads * d_v)
    out = ctx @ params["fc_t"]

    def ln(x, g, b):
        mu = jnp.mean(x, axis=-1, keepdims=True)
        var = jnp.mean((x - mu) ** 2, axis=-1, keepdims=True)
        return (x - mu) * jax.lax.rsqrt(var + 1e-5) * g + b

    nm1 = ln(out, params["g1"][0], params["b1"][0])
    return ln(nm1 + enc_inputs, params["g2"][0], params["b2"][0])


if __name__ == "__main__":
    # Small shapes consistent with the module.
    B, N = 2, 8
    d_model, d_k, d_v, n_heads = 32, 8, 8, 4

    key = jax.random.PRNGKey(0)
    keys = jax.random.split(key, 12)

    enc_inputs = jax.random.normal(keys[0], (B, N, d_model), dtype=jnp.float32)
    # boolean mask as float (1.0 = masked position)
    attn_mask = (jax.random.uniform(keys[1], (B, N, N)) < 0.2).astype(jnp.float32)
    matrix = jax.random.uniform(keys[2], (B, n_heads, N, N), dtype=jnp.float32)

    def init(k, shape, scale=0.1):
        return scale * jax.random.normal(k, shape, dtype=jnp.float32)

    params = {
        # Linear weights stored pre-transposed (in_features, out_features)
        "wq_t": init(keys[3], (d_model, n_heads * d_k)),
        "wk_t": init(keys[4], (d_model, n_heads * d_k)),
        "wv_t": init(keys[5], (d_model, n_heads * d_v)),
        "fc_t": init(keys[6], (n_heads * d_v, d_model)),
        # LayerNorm affine params, kept 2D (1, d_model) for TPU-friendly layout
        "g1": jnp.ones((1, d_model), jnp.float32) + init(keys[7], (1, d_model), 0.01),
        "b1": init(keys[8], (1, d_model), 0.01),
        "g2": jnp.ones((1, d_model), jnp.float32) + init(keys[9], (1, d_model), 0.01),
        "b2": init(keys[10], (1, d_model), 0.01),
    }

    out = encoder_layer(enc_inputs, attn_mask, matrix, params,
                        n_heads=n_heads, d_k=d_k, d_v=d_v)
    out = jax.block_until_ready(out)

    ref = _reference(enc_inputs, attn_mask, matrix, params,
                     n_heads=n_heads, d_k=d_k, d_v=d_v)
    assert out.shape == (B, N, d_model)
    # Tolerance reflects bf16 matmul inputs / bf16 matrix stream only
    # (softmax normalization is exact f32); tighter than the previous 5e-2.
    assert jnp.allclose(out, ref, rtol=3e-2, atol=3e-2), "mismatch vs reference"

    print("KERNEL_OK")
</pallas_src>

<mosaic_0001>
module attributes {stable_mosaic.version = 11 : i64} {
  func.func @_encoder_layer_kernel(%arg0: i32, %arg1: memref<2x8x32xf32, #tpu.memory_space<vmem>>, %arg2: memref<2x8x8xbf16, #tpu.memory_space<vmem>>, %arg3: memref<2x4x8x8xbf16, #tpu.memory_space<vmem>>, %arg4: memref<32x32xbf16, #tpu.memory_space<vmem>>, %arg5: memref<32x32xbf16, #tpu.memory_space<vmem>>, %arg6: memref<32x32xbf16, #tpu.memory_space<vmem>>, %arg7: memref<32x32xbf16, #tpu.memory_space<vmem>>, %arg8: memref<1x32xf32, #tpu.memory_space<vmem>>, %arg9: memref<1x32xf32, #tpu.memory_space<vmem>>, %arg10: memref<1x32xf32, #tpu.memory_space<vmem>>, %arg11: memref<1x32xf32, #tpu.memory_space<vmem>>, %arg12: memref<2x8x32xf32, #tpu.memory_space<vmem>>, %arg13: memref<16x32xf32, #tpu.memory_space<vmem>>) attributes {dimension_semantics = [#tpu.dimension_semantics<parallel>], iteration_bounds = array<i64: 1>, scalar_prefetch = 0 : i64, scratch_operands = 1 : i64, tpu.core_type = #tpu.core_type<tc>, window_params = [{transform_indices = @transform_0, window_bounds = array<i64: 2, 8, 32>}, {transform_indices = @transform_1, window_bounds = array<i64: 2, 8, 8>}, {transform_indices = @transform_2, window_bounds = array<i64: 2, 4, 8, 8>}, {pipeline_mode = #tpu.pipeline_mode<synchronous>, transform_indices = @transform_3, window_bounds = array<i64: 32, 32>}, {pipeline_mode = #tpu.pipeline_mode<synchronous>, transform_indices = @transform_4, window_bounds = array<i64: 32, 32>}, {pipeline_mode = #tpu.pipeline_mode<synchronous>, transform_indices = @transform_5, window_bounds = array<i64: 32, 32>}, {pipeline_mode = #tpu.pipeline_mode<synchronous>, transform_indices = @transform_6, window_bounds = array<i64: 32, 32>}, {pipeline_mode = #tpu.pipeline_mode<synchronous>, transform_indices = @transform_7, window_bounds = array<i64: 1, 32>}, {pipeline_mode = #tpu.pipeline_mode<synchronous>, transform_indices = @transform_8, window_bounds = array<i64: 1, 32>}, {pipeline_mode = #tpu.pipeline_mode<synchronous>, transform_indices = @transform_9, window_bounds = array<i64: 1, 32>}, {pipeline_mode = #tpu.pipeline_mode<synchronous>, transform_indices = @transform_10, window_bounds = array<i64: 1, 32>}, {transform_indices = @transform_11, window_bounds = array<i64: 2, 8, 32>}]} {
    %c0 = arith.constant 0 : index
    %c0_0 = arith.constant 0 : index
    %c0_1 = arith.constant 0 : index
    %0 = vector.load %arg1[%c0, %c0_0, %c0_1] : memref<2x8x32xf32, #tpu.memory_space<vmem>>, vector<2x8x32xf32>
    %1 = vector.shape_cast %0 : vector<2x8x32xf32> to vector<16x32xf32>
    %2 = arith.truncf %1 : vector<16x32xf32> to vector<16x32xbf16>
    %c0_2 = arith.constant 0 : index
    %c0_3 = arith.constant 0 : index
    %3 = vector.load %arg4[%c0_2, %c0_3] : memref<32x32xbf16, #tpu.memory_space<vmem>>, vector<32x32xbf16>
    %cst = arith.constant dense<0.000000e+00> : vector<16x32xf32>
    %4 = tpu.matmul %2, %3, %cst {dimension_numbers = #tpu.dot_dimension_numbers<[1], [0], [0], [1], [0, 0, 1, 1], [], []>} : vector<16x32xbf16>, vector<32x32xbf16>, vector<16x32xf32> -> vector<16x32xf32>
    %c0_4 = arith.constant 0 : index
    %c0_5 = arith.constant 0 : index
    %5 = vector.load %arg5[%c0_4, %c0_5] : memref<32x32xbf16, #tpu.memory_space<vmem>>, vector<32x32xbf16>
    %cst_6 = arith.constant dense<0.000000e+00> : vector<16x32xf32>
    %6 = tpu.matmul %2, %5, %cst_6 {dimension_numbers = #tpu.dot_dimension_numbers<[1], [0], [0], [1], [0, 0, 1, 1], [], []>} : vector<16x32xbf16>, vector<32x32xbf16>, vector<16x32xf32> -> vector<16x32xf32>
    %c0_7 = arith.constant 0 : index
    %c0_8 = arith.constant 0 : index
    %7 = vector.load %arg6[%c0_7, %c0_8] : memref<32x32xbf16, #tpu.memory_space<vmem>>, vector<32x32xbf16>
    %cst_9 = arith.constant dense<0.000000e+00> : vector<16x32xf32>
    %8 = tpu.matmul %2, %7, %cst_9 {dimension_numbers = #tpu.dot_dimension_numbers<[1], [0], [0], [1], [0, 0, 1, 1], [], []>} : vector<16x32xbf16>, vector<32x32xbf16>, vector<16x32xf32> -> vector<16x32xf32>
    %c0_10 = arith.constant 0 : index
    %c0_11 = arith.constant 0 : index
    %c0_12 = arith.constant 0 : index
    %c0_13 = arith.constant 0 : index
    %9 = vector.load %arg3[%c0_10, %c0_11, %c0_12, %c0_13] : memref<2x4x8x8xbf16, #tpu.memory_space<vmem>>, vector<2x4x8x8xbf16>
    %c0_14 = arith.constant 0 : index
    %c0_15 = arith.constant 0 : index
    %c0_16 = arith.constant 0 : index
    %10 = vector.load %arg2[%c0_14, %c0_15, %c0_16] : memref<2x8x8xbf16, #tpu.memory_space<vmem>>, vector<2x8x8xbf16>
    %cst_17 = arith.constant 0.000000e+00 : bf16
    %11 = vector.broadcast %cst_17 : bf16 to vector<2x8x8xbf16>
    %12 = arith.cmpf ogt, %10, %11 : vector<2x8x8xbf16>
    %13 = vector.extract_strided_slice %4 {offsets = [0, 0], sizes = [16, 8], strides = [1, 1]} : vector<16x32xf32> to vector<16x8xf32>
    %14 = vector.shape_cast %13 : vector<16x8xf32> to vector<2x8x8xf32>
    %15 = arith.truncf %14 : vector<2x8x8xf32> to vector<2x8x8xbf16>
    %16 = vector.extract_strided_slice %6 {offsets = [0, 0], sizes = [16, 8], strides = [1, 1]} : vector<16x32xf32> to vector<16x8xf32>
    %17 = vector.shape_cast %16 : vector<16x8xf32> to vector<2x8x8xf32>
    %18 = arith.truncf %17 : vector<2x8x8xf32> to vector<2x8x8xbf16>
    %19 = vector.extract_strided_slice %8 {offsets = [0, 0], sizes = [16, 8], strides = [1, 1]} : vector<16x32xf32> to vector<16x8xf32>
    %20 = vector.shape_cast %19 : vector<16x8xf32> to vector<2x8x8xf32>
    %21 = arith.truncf %20 : vector<2x8x8xf32> to vector<2x8x8xbf16>
    "tpu.trace_start"() <{level = 10 : i32, message = "bqd,bkd->bqk"}> : () -> ()
    %cst_18 = arith.constant dense<0.000000e+00> : vector<2x8x8xf32>
    %22 = tpu.matmul %15, %18, %cst_18 {dimension_numbers = #tpu.dot_dimension_numbers<[2], [2], [1], [1], [0, 0, 0, 1, 1, 1], [0], [0]>} : vector<2x8x8xbf16>, vector<2x8x8xbf16>, vector<2x8x8xf32> -> vector<2x8x8xf32>
    "tpu.trace_stop"() : () -> ()
    %23 = vector.extract_strided_slice %9 {offsets = [0, 0, 0, 0], sizes = [2, 1, 8, 8], strides = [1, 1, 1, 1]} : vector<2x4x8x8xbf16> to vector<2x1x8x8xbf16>
    %24 = vector.shape_cast %23 : vector<2x1x8x8xbf16> to vector<2x8x8xbf16>
    %25 = arith.extf %24 : vector<2x8x8xbf16> to vector<2x8x8xf32>
    %26 = arith.mulf %22, %25 : vector<2x8x8xf32>
    %cst_19 = arith.constant -1.000000e+09 : f32
    %27 = vector.broadcast %cst_19 : f32 to vector<2x8x8xf32>
    %28 = arith.select %12, %27, %26 : vector<2x8x8xi1>, vector<2x8x8xf32>
    %cst_20 = arith.constant dense<0xFF800000> : vector<2x8xf32>
    %29 = vector.multi_reduction <maximumf>, %28, %cst_20 [2] : vector<2x8x8xf32> to vector<2x8xf32>
    %30 = vector.shape_cast %29 : vector<2x8xf32> to vector<2x8x1xf32>
    %31 = vector.broadcast %30 : vector<2x8x1xf32> to vector<2x8x8xf32>
    %32 = arith.subf %28, %31 : vector<2x8x8xf32>
    %33 = math.exp %32 : vector<2x8x8xf32>
    %cst_21 = arith.constant dense<0.000000e+00> : vector<2x8xf32>
    %34 = vector.multi_reduction <add>, %33, %cst_21 [2] : vector<2x8x8xf32> to vector<2x8xf32>
    %35 = vector.shape_cast %34 : vector<2x8xf32> to vector<2x8x1xf32>
    %36 = vector.broadcast %35 : vector<2x8x1xf32> to vector<2x8x8xf32>
    %37 = arith.divf %33, %36 : vector<2x8x8xf32>
    %38 = arith.truncf %37 : vector<2x8x8xf32> to vector<2x8x8xbf16>
    "tpu.trace_start"() <{level = 10 : i32, message = "bqk,bkd->bqd"}> : () -> ()
    %cst_22 = arith.constant dense<0.000000e+00> : vector<2x8x8xf32>
    %39 = tpu.matmul %38, %21, %cst_22 {dimension_numbers = #tpu.dot_dimension_numbers<[2], [1], [1], [2], [0, 0, 0, 1, 1, 2], [0], [0]>} : vector<2x8x8xbf16>, vector<2x8x8xbf16>, vector<2x8x8xf32> -> vector<2x8x8xf32>
    "tpu.trace_stop"() : () -> ()
    %40 = vector.shape_cast %39 : vector<2x8x8xf32> to vector<16x8xf32>
    %c0_23 = arith.constant 0 : index
    %c0_24 = arith.constant 0 : index
    %41 = vector.load %arg13[%c0_23, %c0_24] : memref<16x32xf32, #tpu.memory_space<vmem>>, vector<16x8xf32>
    tpu.vector_store %arg13[%c0_23, %c0_24], %40 {strides = array<i32>} : memref<16x32xf32, #tpu.memory_space<vmem>>, vector<16x8xf32>,
    %42 = vector.extract_strided_slice %4 {offsets = [0, 8], sizes = [16, 8], strides = [1, 1]} : vector<16x32xf32> to vector<16x8xf32>
    %43 = vector.shape_cast %42 : vector<16x8xf32> to vector<2x8x8xf32>
    %44 = arith.truncf %43 : vector<2x8x8xf32> to vector<2x8x8xbf16>
    %45 = vector.extract_strided_slice %6 {offsets = [0, 8], sizes = [16, 8], strides = [1, 1]} : vector<16x32xf32> to vector<16x8xf32>
    %46 = vector.shape_cast %45 : vector<16x8xf32> to vector<2x8x8xf32>
    %47 = arith.truncf %46 : vector<2x8x8xf32> to vector<2x8x8xbf16>
    %48 = vector.extract_strided_slice %8 {offsets = [0, 8], sizes = [16, 8], strides = [1, 1]} : vector<16x32xf32> to vector<16x8xf32>
    %49 = vector.shape_cast %48 : vector<16x8xf32> to vector<2x8x8xf32>
    %50 = arith.truncf %49 : vector<2x8x8xf32> to vector<2x8x8xbf16>
    "tpu.trace_start"() <{level = 10 : i32, message = "bqd,bkd->bqk"}> : () -> ()
    %cst_25 = arith.constant dense<0.000000e+00> : vector<2x8x8xf32>
    %51 = tpu.matmul %44, %47, %cst_25 {dimension_numbers = #tpu.dot_dimension_numbers<[2], [2], [1], [1], [0, 0, 0, 1, 1, 1], [0], [0]>} : vector<2x8x8xbf16>, vector<2x8x8xbf16>, vector<2x8x8xf32> -> vector<2x8x8xf32>
    "tpu.trace_stop"() : () -> ()
    %52 = vector.extract_strided_slice %9 {offsets = [0, 1, 0, 0], sizes = [2, 1, 8, 8], strides = [1, 1, 1, 1]} : vector<2x4x8x8xbf16> to vector<2x1x8x8xbf16>
    %53 = vector.shape_cast %52 : vector<2x1x8x8xbf16> to vector<2x8x8xbf16>
    %54 = arith.extf %53 : vector<2x8x8xbf16> to vector<2x8x8xf32>
    %55 = arith.mulf %51, %54 : vector<2x8x8xf32>
    %cst_26 = arith.constant -1.000000e+09 : f32
    %56 = vector.broadcast %cst_26 : f32 to vector<2x8x8xf32>
    %57 = arith.select %12, %56, %55 : vector<2x8x8xi1>, vector<2x8x8xf32>
    %cst_27 = arith.constant dense<0xFF800000> : vector<2x8xf32>
    %58 = vector.multi_reduction <maximumf>, %57, %cst_27 [2] : vector<2x8x8xf32> to vector<2x8xf32>
    %59 = vector.shape_cast %58 : vector<2x8xf32> to vector<2x8x1xf32>
    %60 = vector.broadcast %59 : vector<2x8x1xf32> to vector<2x8x8xf32>
    %61 = arith.subf %57, %60 : vector<2x8x8xf32>
    %62 = math.exp %61 : vector<2x8x8xf32>
    %cst_28 = arith.constant dense<0.000000e+00> : vector<2x8xf32>
    %63 = vector.multi_reduction <add>, %62, %cst_28 [2] : vector<2x8x8xf32> to vector<2x8xf32>
    %64 = vector.shape_cast %63 : vector<2x8xf32> to vector<2x8x1xf32>
    %65 = vector.broadcast %64 : vector<2x8x1xf32> to vector<2x8x8xf32>
    %66 = arith.divf %62, %65 : vector<2x8x8xf32>
    %67 = arith.truncf %66 : vector<2x8x8xf32> to vector<2x8x8xbf16>
    "tpu.trace_start"() <{level = 10 : i32, message = "bqk,bkd->bqd"}> : () -> ()
    %cst_29 = arith.constant dense<0.000000e+00> : vector<2x8x8xf32>
    %68 = tpu.matmul %67, %50, %cst_29 {dimension_numbers = #tpu.dot_dimension_numbers<[2], [1], [1], [2], [0, 0, 0, 1, 1, 2], [0], [0]>} : vector<2x8x8xbf16>, vector<2x8x8xbf16>, vector<2x8x8xf32> -> vector<2x8x8xf32>
    "tpu.trace_stop"() : () -> ()
    %69 = vector.shape_cast %68 : vector<2x8x8xf32> to vector<16x8xf32>
    %c0_30 = arith.constant 0 : index
    %c8 = arith.constant 8 : index
    %70 = vector.load %arg13[%c0_30, %c8] : memref<16x32xf32, #tpu.memory_space<vmem>>, vector<16x8xf32>
    tpu.vector_store %arg13[%c0_30, %c8], %69 {strides = array<i32>} : memref<16x32xf32, #tpu.memory_space<vmem>>, vector<16x8xf32>,
    %71 = vector.extract_strided_slice %4 {offsets = [0, 16], sizes = [16, 8], strides = [1, 1]} : vector<16x32xf32> to vector<16x8xf32>
    %72 = vector.shape_cast %71 : vector<16x8xf32> to vector<2x8x8xf32>
    %73 = arith.truncf %72 : vector<2x8x8xf32> to vector<2x8x8xbf16>
    %74 = vector.extract_strided_slice %6 {offsets = [0, 16], sizes = [16, 8], strides = [1, 1]} : vector<16x32xf32> to vector<16x8xf32>
    %75 = vector.shape_cast %74 : vector<16x8xf32> to vector<2x8x8xf32>
    %76 = arith.truncf %75 : vector<2x8x8xf32> to vector<2x8x8xbf16>
    %77 = vector.extract_strided_slice %8 {offsets = [0, 16], sizes = [16, 8], strides = [1, 1]} : vector<16x32xf32> to vector<16x8xf32>
    %78 = vector.shape_cast %77 : vector<16x8xf32> to vector<2x8x8xf32>
    %79 = arith.truncf %78 : vector<2x8x8xf32> to vector<2x8x8xbf16>
    "tpu.trace_start"() <{level = 10 : i32, message = "bqd,bkd->bqk"}> : () -> ()
    %cst_31 = arith.constant dense<0.000000e+00> : vector<2x8x8xf32>
    %80 = tpu.matmul %73, %76, %cst_31 {dimension_numbers = #tpu.dot_dimension_numbers<[2], [2], [1], [1], [0, 0, 0, 1, 1, 1], [0], [0]>} : vector<2x8x8xbf16>, vector<2x8x8xbf16>, vector<2x8x8xf32> -> vector<2x8x8xf32>
    "tpu.trace_stop"() : () -> ()
    %81 = vector.extract_strided_slice %9 {offsets = [0, 2, 0, 0], sizes = [2, 1, 8, 8], strides = [1, 1, 1, 1]} : vector<2x4x8x8xbf16> to vector<2x1x8x8xbf16>
    %82 = vector.shape_cast %81 : vector<2x1x8x8xbf16> to vector<2x8x8xbf16>
    %83 = arith.extf %82 : vector<2x8x8xbf16> to vector<2x8x8xf32>
    %84 = arith.mulf %80, %83 : vector<2x8x8xf32>
    %cst_32 = arith.constant -1.000000e+09 : f32
    %85 = vector.broadcast %cst_32 : f32 to vector<2x8x8xf32>
    %86 = arith.select %12, %85, %84 : vector<2x8x8xi1>, vector<2x8x8xf32>
    %cst_33 = arith.constant dense<0xFF800000> : vector<2x8xf32>
    %87 = vector.multi_reduction <maximumf>, %86, %cst_33 [2] : vector<2x8x8xf32> to vector<2x8xf32>
    %88 = vector.shape_cast %87 : vector<2x8xf32> to vector<2x8x1xf32>
    %89 = vector.broadcast %88 : vector<2x8x1xf32> to vector<2x8x8xf32>
    %90 = arith.subf %86, %89 : vector<2x8x8xf32>
    %91 = math.exp %90 : vector<2x8x8xf32>
    %cst_34 = arith.constant dense<0.000000e+00> : vector<2x8xf32>
    %92 = vector.multi_reduction <add>, %91, %cst_34 [2] : vector<2x8x8xf32> to vector<2x8xf32>
    %93 = vector.shape_cast %92 : vector<2x8xf32> to vector<2x8x1xf32>
    %94 = vector.broadcast %93 : vector<2x8x1xf32> to vector<2x8x8xf32>
    %95 = arith.divf %91, %94 : vector<2x8x8xf32>
    %96 = arith.truncf %95 : vector<2x8x8xf32> to vector<2x8x8xbf16>
    "tpu.trace_start"() <{level = 10 : i32, message = "bqk,bkd->bqd"}> : () -> ()
    %cst_35 = arith.constant dense<0.000000e+00> : vector<2x8x8xf32>
    %97 = tpu.matmul %96, %79, %cst_35 {dimension_numbers = #tpu.dot_dimension_numbers<[2], [1], [1], [2], [0, 0, 0, 1, 1, 2], [0], [0]>} : vector<2x8x8xbf16>, vector<2x8x8xbf16>, vector<2x8x8xf32> -> vector<2x8x8xf32>
    "tpu.trace_stop"() : () -> ()
    %98 = vector.shape_cast %97 : vector<2x8x8xf32> to vector<16x8xf32>
    %c0_36 = arith.constant 0 : index
    %c16 = arith.constant 16 : index
    %99 = vector.load %arg13[%c0_36, %c16] : memref<16x32xf32, #tpu.memory_space<vmem>>, vector<16x8xf32>
    tpu.vector_store %arg13[%c0_36, %c16], %98 {strides = array<i32>} : memref<16x32xf32, #tpu.memory_space<vmem>>, vector<16x8xf32>,
    %100 = vector.extract_strided_slice %4 {offsets = [0, 24], sizes = [16, 8], strides = [1, 1]} : vector<16x32xf32> to vector<16x8xf32>
    %101 = vector.shape_cast %100 : vector<16x8xf32> to vector<2x8x8xf32>
    %102 = arith.truncf %101 : vector<2x8x8xf32> to vector<2x8x8xbf16>
    %103 = vector.extract_strided_slice %6 {offsets = [0, 24], sizes = [16, 8], strides = [1, 1]} : vector<16x32xf32> to vector<16x8xf32>
    %104 = vector.shape_cast %103 : vector<16x8xf32> to vector<2x8x8xf32>
    %105 = arith.truncf %104 : vector<2x8x8xf32> to vector<2x8x8xbf16>
    %106 = vector.extract_strided_slice %8 {offsets = [0, 24], sizes = [16, 8], strides = [1, 1]} : vector<16x32xf32> to vector<16x8xf32>
    %107 = vector.shape_cast %106 : vector<16x8xf32> to vector<2x8x8xf32>
    %108 = arith.truncf %107 : vector<2x8x8xf32> to vector<2x8x8xbf16>
    "tpu.trace_start"() <{level = 10 : i32, message = "bqd,bkd->bqk"}> : () -> ()
    %cst_37 = arith.constant dense<0.000000e+00> : vector<2x8x8xf32>
    %109 = tpu.matmul %102, %105, %cst_37 {dimension_numbers = #tpu.dot_dimension_numbers<[2], [2], [1], [1], [0, 0, 0, 1, 1, 1], [0], [0]>} : vector<2x8x8xbf16>, vector<2x8x8xbf16>, vector<2x8x8xf32> -> vector<2x8x8xf32>
    "tpu.trace_stop"() : () -> ()
    %110 = vector.extract_strided_slice %9 {offsets = [0, 3, 0, 0], sizes = [2, 1, 8, 8], strides = [1, 1, 1, 1]} : vector<2x4x8x8xbf16> to vector<2x1x8x8xbf16>
    %111 = vector.shape_cast %110 : vector<2x1x8x8xbf16> to vector<2x8x8xbf16>
    %112 = arith.extf %111 : vector<2x8x8xbf16> to vector<2x8x8xf32>
    %113 = arith.mulf %109, %112 : vector<2x8x8xf32>
    %cst_38 = arith.constant -1.000000e+09 : f32
    %114 = vector.broadcast %cst_38 : f32 to vector<2x8x8xf32>
    %115 = arith.select %12, %114, %113 : vector<2x8x8xi1>, vector<2x8x8xf32>
    %cst_39 = arith.constant dense<0xFF800000> : vector<2x8xf32>
    %116 = vector.multi_reduction <maximumf>, %115, %cst_39 [2] : vector<2x8x8xf32> to vector<2x8xf32>
    %117 = vector.shape_cast %116 : vector<2x8xf32> to vector<2x8x1xf32>
    %118 = vector.broadcast %117 : vector<2x8x1xf32> to vector<2x8x8xf32>
    %119 = arith.subf %115, %118 : vector<2x8x8xf32>
    %120 = math.exp %119 : vector<2x8x8xf32>
    %cst_40 = arith.constant dense<0.000000e+00> : vector<2x8xf32>
    %121 = vector.multi_reduction <add>, %120, %cst_40 [2] : vector<2x8x8xf32> to vector<2x8xf32>
    %122 = vector.shape_cast %121 : vector<2x8xf32> to vector<2x8x1xf32>
    %123 = vector.broadcast %122 : vector<2x8x1xf32> to vector<2x8x8xf32>
    %124 = arith.divf %120, %123 : vector<2x8x8xf32>
    %125 = arith.truncf %124 : vector<2x8x8xf32> to vector<2x8x8xbf16>
    "tpu.trace_start"() <{level = 10 : i32, message = "bqk,bkd->bqd"}> : () -> ()
    %cst_41 = arith.constant dense<0.000000e+00> : vector<2x8x8xf32>
    %126 = tpu.matmul %125, %108, %cst_41 {dimension_numbers = #tpu.dot_dimension_numbers<[2], [1], [1], [2], [0, 0, 0, 1, 1, 2], [0], [0]>} : vector<2x8x8xbf16>, vector<2x8x8xbf16>, vector<2x8x8xf32> -> vector<2x8x8xf32>
    "tpu.trace_stop"() : () -> ()
    %127 = vector.shape_cast %126 : vector<2x8x8xf32> to vector<16x8xf32>
    %c0_42 = arith.constant 0 : index
    %c24 = arith.constant 24 : index
    %128 = vector.load %arg13[%c0_42, %c24] : memref<16x32xf32, #tpu.memory_space<vmem>>, vector<16x8xf32>
    tpu.vector_store %arg13[%c0_42, %c24], %127 {strides = array<i32>} : memref<16x32xf32, #tpu.memory_space<vmem>>, vector<16x8xf32>,
    %c0_43 = arith.constant 0 : index
    %c0_44 = arith.constant 0 : index
    %129 = vector.load %arg13[%c0_43, %c0_44] : memref<16x32xf32, #tpu.memory_space<vmem>>, vector<16x32xf32>
    %130 = arith.truncf %129 : vector<16x32xf32> to vector<16x32xbf16>
    %c0_45 = arith.constant 0 : index
    %c0_46 = arith.constant 0 : index
    %131 = vector.load %arg7[%c0_45, %c0_46] : memref<32x32xbf16, #tpu.memory_space<vmem>>, vector<32x32xbf16>
    %cst_47 = arith.constant dense<0.000000e+00> : vector<16x32xf32>
    %132 = tpu.matmul %130, %131, %cst_47 {dimension_numbers = #tpu.dot_dimension_numbers<[1], [0], [0], [1], [0, 0, 1, 1], [], []>} : vector<16x32xbf16>, vector<32x32xbf16>, vector<16x32xf32> -> vector<16x32xf32>
    %cst_48 = arith.constant dense<0.000000e+00> : vector<16xf32>
    %133 = vector.multi_reduction <add>, %132, %cst_48 [1] : vector<16x32xf32> to vector<16xf32>
    %134 = vector.shape_cast %133 : vector<16xf32> to vector<16x1xf32>
    %cst_49 = arith.constant 3.200000e+01 : f32
    %135 = vector.broadcast %cst_49 : f32 to vector<16x1xf32>
    %136 = arith.divf %134, %135 : vector<16x1xf32>
    %137 = arith.mulf %132, %132 : vector<16x32xf32>
    %cst_50 = arith.constant dense<0.000000e+00> : vector<16xf32>
    %138 = vector.multi_reduction <add>, %137, %cst_50 [1] : vector<16x32xf32> to vector<16xf32>
    %139 = vector.shape_cast %138 : vector<16xf32> to vector<16x1xf32>
    %cst_51 = arith.constant 3.200000e+01 : f32
    %140 = vector.broadcast %cst_51 : f32 to vector<16x1xf32>
    %141 = arith.divf %139, %140 : vector<16x1xf32>
    %142 = arith.mulf %136, %136 : vector<16x1xf32>
    %143 = arith.subf %141, %142 : vector<16x1xf32>
    %144 = vector.broadcast %136 : vector<16x1xf32> to vector<16x32xf32>
    %145 = arith.subf %132, %144 : vector<16x32xf32>
    %cst_52 = arith.constant 9.99999974E-6 : f32
    %146 = vector.broadcast %cst_52 : f32 to vector<16x1xf32>
    %147 = arith.addf %143, %146 : vector<16x1xf32>
    %148 = math.rsqrt %147 : vector<16x1xf32>
    %149 = vector.broadcast %148 : vector<16x1xf32> to vector<16x32xf32>
    %150 = arith.mulf %145, %149 : vector<16x32xf32>
    %c0_53 = arith.constant 0 : index
    %c0_54 = arith.constant 0 : index
    %151 = vector.load %arg8[%c0_53, %c0_54] : memref<1x32xf32, #tpu.memory_space<vmem>>, vector<1x32xf32>
    %152 = vector.broadcast %151 : vector<1x32xf32> to vector<16x32xf32>
    %153 = arith.mulf %150, %152 : vector<16x32xf32>
    %c0_55 = arith.constant 0 : index
    %c0_56 = arith.constant 0 : index
    %154 = vector.load %arg9[%c0_55, %c0_56] : memref<1x32xf32, #tpu.memory_space<vmem>>, vector<1x32xf32>
    %155 = vector.broadcast %154 : vector<1x32xf32> to vector<16x32xf32>
    %156 = arith.addf %153, %155 : vector<16x32xf32>
    %157 = arith.addf %156, %1 : vector<16x32xf32>
    %cst_57 = arith.constant dense<0.000000e+00> : vector<16xf32>
    %158 = vector.multi_reduction <add>, %157, %cst_57 [1] : vector<16x32xf32> to vector<16xf32>
    %159 = vector.shape_cast %158 : vector<16xf32> to vector<16x1xf32>
    %cst_58 = arith.constant 3.200000e+01 : f32
    %160 = vector.broadcast %cst_58 : f32 to vector<16x1xf32>
    %161 = arith.divf %159, %160 : vector<16x1xf32>
    %162 = arith.mulf %157, %157 : vector<16x32xf32>
    %cst_59 = arith.constant dense<0.000000e+00> : vector<16xf32>
    %163 = vector.multi_reduction <add>, %162, %cst_59 [1] : vector<16x32xf32> to vector<16xf32>
    %164 = vector.shape_cast %163 : vector<16xf32> to vector<16x1xf32>
    %cst_60 = arith.constant 3.200000e+01 : f32
    %165 = vector.broadcast %cst_60 : f32 to vector<16x1xf32>
    %166 = arith.divf %164, %165 : vector<16x1xf32>
    %167 = arith.mulf %161, %161 : vector<16x1xf32>
    %168 = arith.subf %166, %167 : vector<16x1xf32>
    %169 = vector.broadcast %161 : vector<16x1xf32> to vector<16x32xf32>
    %170 = arith.subf %157, %169 : vector<16x32xf32>
    %cst_61 = arith.constant 9.99999974E-6 : f32
    %171 = vector.broadcast %cst_61 : f32 to vector<16x1xf32>
    %172 = arith.addf %168, %171 : vector<16x1xf32>
    %173 = math.rsqrt %172 : vector<16x1xf32>
    %174 = vector.broadcast %173 : vector<16x1xf32> to vector<16x32xf32>
    %175 = arith.mulf %170, %174 : vector<16x32xf32>
    %c0_62 = arith.constant 0 : index
    %c0_63 = arith.constant 0 : index
    %176 = vector.load %arg10[%c0_62, %c0_63] : memref<1x32xf32, #tpu.memory_space<vmem>>, vector<1x32xf32>
    %177 = vector.broadcast %176 : vector<1x32xf32> to vector<16x32xf32>
    %178 = arith.mulf %175, %177 : vector<16x32xf32>
    %c0_64 = arith.constant 0 : index
    %c0_65 = arith.constant 0 : index
    %179 = vector.load %arg11[%c0_64, %c0_65] : memref<1x32xf32, #tpu.memory_space<vmem>>, vector<1x32xf32>
    %180 = vector.broadcast %179 : vector<1x32xf32> to vector<16x32xf32>
    %181 = arith.addf %178, %180 : vector<16x32xf32>
    %182 = vector.shape_cast %181 : vector<16x32xf32> to vector<2x8x32xf32>
    %c0_66 = arith.constant 0 : index
    %c0_67 = arith.constant 0 : index
    %c0_68 = arith.constant 0 : index
    %183 = vector.load %arg12[%c0_66, %c0_67, %c0_68] : memref<2x8x32xf32, #tpu.memory_space<vmem>>, vector<2x8x32xf32>
    tpu.vector_store %arg12[%c0_66, %c0_67, %c0_68], %182 {strides = array<i32>} : memref<2x8x32xf32, #tpu.memory_space<vmem>>, vector<2x8x32xf32>,
    return
  }
  func.func @transform_0(%arg0: i32) -> (i32, i32, i32) {
    %c0_i32 = arith.constant 0 : i32
    %c0_i32_0 = arith.constant 0 : i32
    %c0_i32_1 = arith.constant 0 : i32
    return %arg0, %c0_i32, %c0_i32_0 : i32, i32, i32
  }
  func.func @transform_1(%arg0: i32) -> (i32, i32, i32) {
    %c0_i32 = arith.constant 0 : i32
    %c0_i32_0 = arith.constant 0 : i32
    %c0_i32_1 = arith.constant 0 : i32
    return %arg0, %c0_i32, %c0_i32_0 : i32, i32, i32
  }
  func.func @transform_2(%arg0: i32) -> (i32, i32, i32, i32) {
    %c0_i32 = arith.constant 0 : i32
    %c0_i32_0 = arith.constant 0 : i32
    %c0_i32_1 = arith.constant 0 : i32
    %c0_i32_2 = arith.constant 0 : i32
    return %arg0, %c0_i32, %c0_i32_0, %c0_i32_1 : i32, i32, i32, i32
  }
  func.func @transform_3(%arg0: i32) -> (i32, i32) {
    %c0_i32 = arith.constant 0 : i32
    %c0_i32_0 = arith.constant 0 : i32
    %c0_i32_1 = arith.constant 0 : i32
    return %c0_i32, %c0_i32_0 : i32, i32
  }
  func.func @transform_4(%arg0: i32) -> (i32, i32) {
    %c0_i32 = arith.constant 0 : i32
    %c0_i32_0 = arith.constant 0 : i32
    %c0_i32_1 = arith.constant 0 : i32
    return %c0_i32, %c0_i32_0 : i32, i32
  }
  func.func @transform_5(%arg0: i32) -> (i32, i32) {
    %c0_i32 = arith.constant 0 : i32
    %c0_i32_0 = arith.constant 0 : i32
    %c0_i32_1 = arith.constant 0 : i32
    return %c0_i32, %c0_i32_0 : i32, i32
  }
  func.func @transform_6(%arg0: i32) -> (i32, i32) {
    %c0_i32 = arith.constant 0 : i32
    %c0_i32_0 = arith.constant 0 : i32
    %c0_i32_1 = arith.constant 0 : i32
    return %c0_i32, %c0_i32_0 : i32, i32
  }
  func.func @transform_7(%arg0: i32) -> (i32, i32) {
    %c0_i32 = arith.constant 0 : i32
    %c0_i32_0 = arith.constant 0 : i32
    %c0_i32_1 = arith.constant 0 : i32
    return %c0_i32, %c0_i32_0 : i32, i32
  }
  func.func @transform_8(%arg0: i32) -> (i32, i32) {
    %c0_i32 = arith.constant 0 : i32
    %c0_i32_0 = arith.constant 0 : i32
    %c0_i32_1 = arith.constant 0 : i32
    return %c0_i32, %c0_i32_0 : i32, i32
  }
  func.func @transform_9(%arg0: i32) -> (i32, i32) {
    %c0_i32 = arith.constant 0 : i32
    %c0_i32_0 = arith.constant 0 : i32
    %c0_i32_1 = arith.constant 0 : i32
    return %c0_i32, %c0_i32_0 : i32, i32
  }
  func.func @transform_10(%arg0: i32) -> (i32, i32) {
    %c0_i32 = arith.constant 0 : i32
    %c0_i32_0 = arith.constant 0 : i32
    %c0_i32_1 = arith.constant 0 : i32
    return %c0_i32, %c0_i32_0 : i32, i32
  }
  func.func @transform_11(%arg0: i32) -> (i32, i32, i32) {
    %c0_i32 = arith.constant 0 : i32
    %c0_i32_0 = arith.constant 0 : i32
    %c0_i32_1 = arith.constant 0 : i32
    return %arg0, %c0_i32, %c0_i32_0 : i32, i32, i32
  }
}

</mosaic_0001>

<llo_original>
// kernel: tpu_custom_call.1
$region0: #{tpu_custom_call.1}
  #allocation0 [shape = 'u32[]', space=smem, size = 0x4, offset = 0x4, fixed_abs, tag = 'smem constant byte address 0x4 - core index']
  #allocation1 [shape = 'u32[144,128]{1,0:T(1,128)}', space=vmem, size = 0x12000, scoped, tag = 'internal scratch']
  #allocation2 [shape = 'f32[16,32]{1,0:T(8,128)}', space=vmem, size = 0x2000, scoped, tag = 'scratch operand']
  %s0 = inlined_call_operand.hbm [shape: f32[2,8,32], index: 0, kind: input, shape index: {}]
  %s1 = inlined_call_operand.hbm [shape: bf16[2,8,8], index: 1, kind: input, shape index: {}]
  %s2 = inlined_call_operand.hbm [shape: bf16[2,4,8,8], index: 2, kind: input, shape index: {}]
  %s3 = inlined_call_operand.hbm [shape: bf16[32,32], index: 3, kind: input, shape index: {}]
  %s4 = inlined_call_operand.hbm [shape: bf16[32,32], index: 4, kind: input, shape index: {}]
  %s5 = inlined_call_operand.hbm [shape: bf16[32,32], index: 5, kind: input, shape index: {}]
  %s6 = inlined_call_operand.hbm [shape: bf16[32,32], index: 6, kind: input, shape index: {}]
  %s7 = inlined_call_operand.vmem [shape: f32[1,32], index: 7, kind: input, shape index: {}]
  %s8 = inlined_call_operand.vmem [shape: f32[1,32], index: 8, kind: input, shape index: {}]
  %s9 = inlined_call_operand.vmem [shape: f32[1,32], index: 9, kind: input, shape index: {}]
  %s10 = inlined_call_operand.vmem [shape: f32[1,32], index: 10, kind: input, shape index: {}]
  %s11 = inlined_call_operand.hbm [shape: f32[2,8,32], index: 11, kind: output, shape index: {}]
  %s12 = sld [smem:[#allocation0]]
  $region82: #{tpu_custom_call.1} parent=0
    _
  %s14 = ssub.s32 1, %s12
  %s15 = scalar_select 0, %s14, %s12
  $region1: #{tpu_custom_call.1} parent=0
    #allocation3 [shape = 'u8[8192]{0}', space=vmem, size = 0x2000, scoped, tag = 'input window, operand 0, single buffered']
    #allocation4 [shape = 's32[1]{0}', space=sflag, size = 0x4, scoped, tag = 'scoped memory for tpu_custom_call.1']
    #allocation5 [shape = 's32[1]{0}', space=sflag, size = 0x4, scoped, tag = 'scoped memory for tpu_custom_call.1']
    #allocation6 [shape = 'u8[4096]{0}', space=vmem, size = 0x1000, scoped, tag = 'input window, operand 1, single buffered']
    #allocation7 [shape = 's32[1]{0}', space=sflag, size = 0x4, scoped, tag = 'scoped memory for tpu_custom_call.1']
    #allocation8 [shape = 'u8[16384]{0}', space=vmem, size = 0x4000, scoped, tag = 'input window, operand 2, single buffered']
    #allocation9 [shape = 'u8[8192]{0}', space=vmem, size = 0x2000, scoped, tag = 'input window, operand 3, single buffered']
    #allocation10 [shape = 's32[1]{0}', space=sflag, size = 0x4, scoped, tag = 'scoped memory for tpu_custom_call.1']
    #allocation11 [shape = 'u8[8192]{0}', space=vmem, size = 0x2000, scoped, tag = 'input window, operand 4, single buffered']
    #allocation12 [shape = 'u8[8192]{0}', space=vmem, size = 0x2000, scoped, tag = 'input window, operand 5, single buffered']
    #allocation13 [shape = 's32[1]{0}', space=sflag, size = 0x4, scoped, tag = 'scoped memory for tpu_custom_call.1']
    #allocation14 [shape = 'u8[8192]{0}', space=vmem, size = 0x2000, scoped, tag = 'input window, operand 6, single buffered']
    #allocation15 [shape = 'u8[8192]{0}', space=vmem, size = 0x2000, scoped, tag = 'output window, operand 0, single buffered']
    %16 = vsyncpa [#allocation4], 0
    %17 = vsyncpa [#allocation7], 0
    %18 = vsyncpa [#allocation10], 0
    %19 = vsyncpa [#allocation13], 0
    %20 = vsyncpa [#allocation5], 0
    // Predicated region
    $region2: #{tpu_custom_call.1} parent=1 // pred_check
      _
    $region3: #{tpu_custom_call.1} parent=1 // pred_check_branch
      %22 = sbr.rel (0) target = $region5
    $region4: #{tpu_custom_call.1} parent=1 // pred_region
      %s24 = ssub.s32 256, 256
      %25 = vsyncadd [#allocation4], %s24
      %s26 = sshll.u32 [#allocation3], 4
      %s27 = int_to_ptr.vmem [resolvable:$true] %s26
      %32 = dma.hbm_to_vmem [thread:$0]  %s0, 256, %s27, [#allocation4], 128, 128, 8
    $region5: #{tpu_custom_call.1} parent=1 // pred_fallthru
      _
    // Predicated region
    $region6: #{tpu_custom_call.1} parent=1 // pred_check
      _
    $region7: #{tpu_custom_call.1} parent=1 // pred_check_branch
      %34 = sbr.rel (0) target = $region9
    $region8: #{tpu_custom_call.1} parent=1 // pred_region
      %s36 = ssub.s32 128, 128
      %37 = vsyncadd [#allocation7], %s36
      %s38 = sshll.u32 [#allocation6], 4
      %s39 = int_to_ptr.vmem [resolvable:$true] %s38
      %44 = dma.hbm_to_vmem [thread:$0]  %s1, 128, %s39, [#allocation7], 64, 64, 4
    $region9: #{tpu_custom_call.1} parent=1 // pred_fallthru
      _
    // Predicated region
    $region10: #{tpu_custom_call.1} parent=1 // pred_check
      _
    $region11: #{tpu_custom_call.1} parent=1 // pred_check_branch
      %46 = sbr.rel (0) target = $region13
    $region12: #{tpu_custom_call.1} parent=1 // pred_region
      %s48 = ssub.s32 512, 512
      %49 = vsyncadd [#allocation7], %s48
      %s50 = sshll.u32 [#allocation8], 4
      %s51 = int_to_ptr.vmem [resolvable:$true] %s50
      %56 = dma.hbm_to_vmem [thread:$0]  %s2, 512, %s51, [#allocation7], 64, 64, 4
    $region13: #{tpu_custom_call.1} parent=1 // pred_fallthru
      _
    // Predicated region
    $region14: #{tpu_custom_call.1} parent=1 // pred_check
      _
    $region15: #{tpu_custom_call.1} parent=1 // pred_check_branch
      %58 = sbr.rel (0) target = $region17
    $region16: #{tpu_custom_call.1} parent=1 // pred_region
      %s60 = ssub.s32 256, 256
      %61 = vsyncadd [#allocation10], %s60
      %s62 = sshll.u32 [#allocation9], 4
      %s63 = int_to_ptr.vmem [resolvable:$true] %s62
      %68 = dma.hbm_to_vmem [thread:$0]  %s3, 256, %s63, [#allocation10], 64, 64, 4
    $region17: #{tpu_custom_call.1} parent=1 // pred_fallthru
      _
    // Predicated region
    $region18: #{tpu_custom_call.1} parent=1 // pred_check
      _
    $region19: #{tpu_custom_call.1} parent=1 // pred_check_branch
      %70 = sbr.rel (0) target = $region21
    $region20: #{tpu_custom_call.1} parent=1 // pred_region
      %s72 = ssub.s32 256, 256
      %73 = vsyncadd [#allocation10], %s72
      %s74 = sshll.u32 [#allocation11], 4
      %s75 = int_to_ptr.vmem [resolvable:$true] %s74
      %80 = dma.hbm_to_vmem [thread:$0]  %s4, 256, %s75, [#allocation10], 64, 64, 4
    $region21: #{tpu_custom_call.1} parent=1 // pred_fallthru
      _
    // Predicated region
    $region22: #{tpu_custom_call.1} parent=1 // pred_check
      _
    $region23: #{tpu_custom_call.1} parent=1 // pred_check_branch
      %82 = sbr.rel (0) target = $region25
    $region24: #{tpu_custom_call.1} parent=1 // pred_region
      %s84 = ssub.s32 256, 256
      %85 = vsyncadd [#allocation13], %s84
      %s86 = sshll.u32 [#allocation12], 4
      %s87 = int_to_ptr.vmem [resolvable:$true] %s86
      %92 = dma.hbm_to_vmem [thread:$0]  %s5, 256, %s87, [#allocation13], 64, 64, 4
    $region25: #{tpu_custom_call.1} parent=1 // pred_fallthru
      _
    // Predicated region
    $region26: #{tpu_custom_call.1} parent=1 // pred_check
      _
    $region27: #{tpu_custom_call.1} parent=1 // pred_check_branch
      %94 = sbr.rel (0) target = $region29
    $region28: #{tpu_custom_call.1} parent=1 // pred_region
      %s96 = ssub.s32 256, 256
      %97 = vsyncadd [#allocation13], %s96
      %s98 = sshll.u32 [#allocation14], 4
      %s99 = int_to_ptr.vmem [resolvable:$true] %s98
      %104 = dma.hbm_to_vmem [thread:$0]  %s6, 256, %s99, [#allocation13], 64, 64, 4
    $region29: #{tpu_custom_call.1} parent=1 // pred_fallthru
      _
    // Predicated region
    $region30: #{tpu_custom_call.1} parent=1 // pred_check
      _
    $region31: #{tpu_custom_call.1} parent=1 // pred_check_branch
      %106 = sbr.rel (0) target = $region33
    $region32: #{tpu_custom_call.1} parent=1 // pred_region
      _
    $region33: #{tpu_custom_call.1} parent=1 // pred_fallthru
      _
    // Predicated region
    $region34: #{tpu_custom_call.1} parent=1 // pred_check
      _
    $region35: #{tpu_custom_call.1} parent=1 // pred_check_branch
      %108 = sbr.rel (0) target = $region37
    $region36: #{tpu_custom_call.1} parent=1 // pred_region
      _
    $region37: #{tpu_custom_call.1} parent=1 // pred_fallthru
      _
    // Predicated region
    $region38: #{tpu_custom_call.1} parent=1 // pred_check
      _
    $region39: #{tpu_custom_call.1} parent=1 // pred_check_branch
      %110 = sbr.rel (0) target = $region41
    $region40: #{tpu_custom_call.1} parent=1 // pred_region
      _
    $region41: #{tpu_custom_call.1} parent=1 // pred_fallthru
      _
    // Predicated region
    $region42: #{tpu_custom_call.1} parent=1 // pred_check
      _
    $region43: #{tpu_custom_call.1} parent=1 // pred_check_branch
      %112 = sbr.rel (0) target = $region45
    $region44: #{tpu_custom_call.1} parent=1 // pred_region
      _
    $region45: #{tpu_custom_call.1} parent=1 // pred_fallthru
      _
    // Predicated region
    $region46: #{tpu_custom_call.1} parent=1 // pred_check
      _
    $region47: #{tpu_custom_call.1} parent=1 // pred_check_branch
      %114 = sbr.rel (0) target = $region49
    $region48: #{tpu_custom_call.1} parent=1 // pred_region
      %115 = dma.done [#allocation4], 256
    $region49: #{tpu_custom_call.1} parent=1 // pred_fallthru
      _
    // Predicated region
    $region50: #{tpu_custom_call.1} parent=1 // pred_check
      _
    $region51: #{tpu_custom_call.1} parent=1 // pred_check_branch
      %117 = sbr.rel (0) target = $region53
    $region52: #{tpu_custom_call.1} parent=1 // pred_region
      %118 = dma.done [#allocation7], 128
    $region53: #{tpu_custom_call.1} parent=1 // pred_fallthru
      _
    // Predicated region
    $region54: #{tpu_custom_call.1} parent=1 // pred_check
      _
    $region55: #{tpu_custom_call.1} parent=1 // pred_check_branch
      %120 = sbr.rel (0) target = $region57
    $region56: #{tpu_custom_call.1} parent=1 // pred_region
      %121 = dma.done [#allocation7], 512
    $region57: #{tpu_custom_call.1} parent=1 // pred_fallthru
      _
    // Predicated region
    $region58: #{tpu_custom_call.1} parent=1 // pred_check
      _
    $region59: #{tpu_custom_call.1} parent=1 // pred_check_branch
      %123 = sbr.rel (0) target = $region61
    $region60: #{tpu_custom_call.1} parent=1 // pred_region
      %124 = dma.done [#allocation10], 256
    $region61: #{tpu_custom_call.1} parent=1 // pred_fallthru
      _
    // Predicated region
    $region62: #{tpu_custom_call.1} parent=1 // pred_check
      _
    $region63: #{tpu_custom_call.1} parent=1 // pred_check_branch
      %126 = sbr.rel (0) target = $region65
    $region64: #{tpu_custom_call.1} parent=1 // pred_region
      %127 = dma.done [#allocation10], 256
    $region65: #{tpu_custom_call.1} parent=1 // pred_fallthru
      _
    // Predicated region
    $region66: #{tpu_custom_call.1} parent=1 // pred_check
      _
    $region67: #{tpu_custom_call.1} parent=1 // pred_check_branch
      %129 = sbr.rel (0) target = $region69
    $region68: #{tpu_custom_call.1} parent=1 // pred_region
      %130 = dma.done [#allocation13], 256
    $region69: #{tpu_custom_call.1} parent=1 // pred_fallthru
      _
    // Predicated region
    $region70: #{tpu_custom_call.1} parent=1 // pred_check
      _
    $region71: #{tpu_custom_call.1} parent=1 // pred_check_branch
      %132 = sbr.rel (0) target = $region73
    $region72: #{tpu_custom_call.1} parent=1 // pred_region
      %133 = dma.done [#allocation13], 256
    $region73: #{tpu_custom_call.1} parent=1 // pred_fallthru
      _
    %v137 = vld [vmem:[#allocation3] sm:$0xff]
    %v138 = vld [vmem:[#allocation3 + $0x8] sm:$0xff]
    %v139 = vpack.c.bf16 %v138, %v137
    %v140 = vld [vmem:[#allocation9] sm:$0xf]
    %v141 = vld [vmem:[#allocation9 + $0x4] sm:$0xf]
    %v142 = vld [vmem:[#allocation9 + $0x8] sm:$0xf]
    %v143 = vld [vmem:[#allocation9 + $0xc] sm:$0xf]
    %v148 = vunpack.c.l.b16 %v140
    %v149 = vunpack.c.l.b16 %v141
    %v150 = vunpack.c.l.b16 %v142
    %v151 = vunpack.c.l.b16 %v143
    %v152 = vpack.c.b16 %v149, %v148
    %v153 = vpack.c.b16 %v151, %v150
    %vm156 = vcmask 261120
    %v158 = vsel %vm156, %v139, 0
    %160 = vmatprep.subr.bf16.mxu0 0
    %161 = vmatpush1.bf16.msra.mxu0 0
    %162 = vmatprep.subr.bf16.mxu0 0
    %163 = vmatpush1.bf16.msra.mxu0 0
    %164 = vmatprep.subr.bf16.mxu0 0
    %165 = vmatpush1.bf16.msra.mxu0 0
    %166 = vmatprep.subr.bf16.mxu0 0
    %167 = vmatpush1.bf16.msra.mxu0 0
    %168 = vmatprep.subr.bf16.mxu0 0
    %169 = vmatpush1.bf16.msra.mxu0 0
    %170 = vmatprep.subr.bf16.mxu0 0
    %171 = vmatpush1.bf16.msra.mxu0 0
    %172 = vmatprep.subr.bf16.mxu0 0
    %173 = vmatpush1.bf16.msra.mxu0 %v153
    %174 = vmatprep.subr.bf16.mxu0 0
    %175 = vmatpush1.bf16.msra.mxu0 %v152
    %176 = vmatprep.subr.bf16.mxu0 0
    %177 = vmatpush2.bf16.msra.mxu0 0
    %178 = vmatprep.subr.bf16.mxu0 0
    %179 = vmatpush2.bf16.msra.mxu0 0
    %180 = vmatprep.subr.bf16.mxu0 0
    %181 = vmatpush2.bf16.msra.mxu0 0
    %182 = vmatprep.subr.bf16.mxu0 0
    %183 = vmatpush2.bf16.msra.mxu0 0
    %184 = vmatprep.subr.bf16.mxu0 0
    %185 = vmatpush2.bf16.msra.mxu0 0
    %186 = vmatprep.subr.bf16.mxu0 0
    %187 = vmatpush2.bf16.msra.mxu0 0
    %188 = vmatprep.subr.bf16.mxu0 0
    %189 = vmatpush2.bf16.msra.mxu0 0
    %190 = vmatprep.subr.bf16.mxu0 0
    %191 = vmatpush2.bf16.msra.mxu0 0
    %192 = vmatprep.mubr.bf16.mxu0 0
    %193 = vmatmul.mubr.bf16.gmra.mxu0 %v158
    %v194 = vpop.f32.mrf.mxu0
    %v195 = vadd.f32 0.0, %v194
    %v196 = vpop.f32.mrf.mxu0
    %v197 = vpop.f32.mrf.mxu0
    %v198 = vadd.f32 0.0, %v197
    %v199 = vpop.f32.mrf.mxu0
    %200 = vdwg.mxu0
    %v201 = vld [vmem:[#allocation11] sm:$0xf]
    %v202 = vld [vmem:[#allocation11 + $0x4] sm:$0xf]
    %v203 = vld [vmem:[#allocation11 + $0x8] sm:$0xf]
    %v204 = vld [vmem:[#allocation11 + $0xc] sm:$0xf]
    %v209 = vunpack.c.l.b16 %v201
    %v210 = vunpack.c.l.b16 %v202
    %v211 = vunpack.c.l.b16 %v203
    %v212 = vunpack.c.l.b16 %v204
    %v213 = vpack.c.b16 %v210, %v209
    %v214 = vpack.c.b16 %v212, %v211
    %217 = vmatprep.subr.bf16.mxu0 0
    %218 = vmatpush1.bf16.msra.mxu0 0
    %219 = vmatprep.subr.bf16.mxu0 0
    %220 = vmatpush1.bf16.msra.mxu0 0
    %221 = vmatprep.subr.bf16.mxu0 0
    %222 = vmatpush1.bf16.msra.mxu0 0
    %223 = vmatprep.subr.bf16.mxu0 0
    %224 = vmatpush1.bf16.msra.mxu0 0
    %225 = vmatprep.subr.bf16.mxu0 0
    %226 = vmatpush1.bf16.msra.mxu0 0
    %227 = vmatprep.subr.bf16.mxu0 0
    %228 = vmatpush1.bf16.msra.mxu0 0
    %229 = vmatprep.subr.bf16.mxu0 0
    %230 = vmatpush1.bf16.msra.mxu0 %v214
    %231 = vmatprep.subr.bf16.mxu0 0
    %232 = vmatpush1.bf16.msra.mxu0 %v213
    %233 = vmatprep.subr.bf16.mxu0 0
    %234 = vmatpush2.bf16.msra.mxu0 0
    %235 = vmatprep.subr.bf16.mxu0 0
    %236 = vmatpush2.bf16.msra.mxu0 0
    %237 = vmatprep.subr.bf16.mxu0 0
    %238 = vmatpush2.bf16.msra.mxu0 0
    %239 = vmatprep.subr.bf16.mxu0 0
    %240 = vmatpush2.bf16.msra.mxu0 0
    %241 = vmatprep.subr.bf16.mxu0 0
    %242 = vmatpush2.bf16.msra.mxu0 0
    %243 = vmatprep.subr.bf16.mxu0 0
    %244 = vmatpush2.bf16.msra.mxu0 0
    %245 = vmatprep.subr.bf16.mxu0 0
    %246 = vmatpush2.bf16.msra.mxu0 0
    %247 = vmatprep.subr.bf16.mxu0 0
    %248 = vmatpush2.bf16.msra.mxu0 0
    %249 = vmatprep.mubr.bf16.mxu0 0
    %250 = vmatmul.mubr.bf16.gmra.mxu0 %v158
    %v251 = vpop.f32.mrf.mxu0
    %v252 = vadd.f32 0.0, %v251
    %v253 = vpop.f32.mrf.mxu0
    %v254 = vpop.f32.mrf.mxu0
    %v255 = vadd.f32 0.0, %v254
    %v256 = vpop.f32.mrf.mxu0
    %257 = vdwg.mxu0
    %v258 = vld [vmem:[#allocation12] sm:$0xf]
    %v259 = vld [vmem:[#allocation12 + $0x4] sm:$0xf]
    %v260 = vld [vmem:[#allocation12 + $0x8] sm:$0xf]
    %v261 = vld [vmem:[#allocation12 + $0xc] sm:$0xf]
    %v266 = vunpack.c.l.b16 %v258
    %v267 = vunpack.c.l.b16 %v259
    %v268 = vunpack.c.l.b16 %v260
    %v269 = vunpack.c.l.b16 %v261
    %v270 = vpack.c.b16 %v267, %v266
    %v271 = vpack.c.b16 %v269, %v268
    %274 = vmatprep.subr.bf16.mxu0 0
    %275 = vmatpush1.bf16.msra.mxu0 0
    %276 = vmatprep.subr.bf16.mxu0 0
    %277 = vmatpush1.bf16.msra.mxu0 0
    %278 = vmatprep.subr.bf16.mxu0 0
    %279 = vmatpush1.bf16.msra.mxu0 0
    %280 = vmatprep.subr.bf16.mxu0 0
    %281 = vmatpush1.bf16.msra.mxu0 0
    %282 = vmatprep.subr.bf16.mxu0 0
    %283 = vmatpush1.bf16.msra.mxu0 0
    %284 = vmatprep.subr.bf16.mxu0 0
    %285 = vmatpush1.bf16.msra.mxu0 0
    %286 = vmatprep.subr.bf16.mxu0 0
    %287 = vmatpush1.bf16.msra.mxu0 %v271
    %288 = vmatprep.subr.bf16.mxu0 0
    %289 = vmatpush1.bf16.msra.mxu0 %v270
    %290 = vmatprep.subr.bf16.mxu0 0
    %291 = vmatpush2.bf16.msra.mxu0 0
    %292 = vmatprep.subr.bf16.mxu0 0
    %293 = vmatpush2.bf16.msra.mxu0 0
    %294 = vmatprep.subr.bf16.mxu0 0
    %295 = vmatpush2.bf16.msra.mxu0 0
    %296 = vmatprep.subr.bf16.mxu0 0
    %297 = vmatpush2.bf16.msra.mxu0 0
    %298 = vmatprep.subr.bf16.mxu0 0
    %299 = vmatpush2.bf16.msra.mxu0 0
    %300 = vmatprep.subr.bf16.mxu0 0
    %301 = vmatpush2.bf16.msra.mxu0 0
    %302 = vmatprep.subr.bf16.mxu0 0
    %303 = vmatpush2.bf16.msra.mxu0 0
    %304 = vmatprep.subr.bf16.mxu0 0
    %305 = vmatpush2.bf16.msra.mxu0 0
    %306 = vmatprep.mubr.bf16.mxu0 0
    %307 = vmatmul.mubr.bf16.gmra.mxu0 %v158
    %v308 = vpop.f32.mrf.mxu0
    %v309 = vadd.f32 0.0, %v308
    %v310 = vpop.f32.mrf.mxu0
    %v311 = vpop.f32.mrf.mxu0
    %v312 = vadd.f32 0.0, %v311
    %v313 = vpop.f32.mrf.mxu0
    %314 = vdwg.mxu0
    %v315 = vld [vmem:[#allocation8] sm:$0xf]
    %v316 = vld [vmem:[#allocation8 + $0x4] sm:$0xf]
    %v317 = vld [vmem:[#allocation8 + $0x8] sm:$0xf]
    %v318 = vld [vmem:[#allocation8 + $0xc] sm:$0xf]
    %v319 = vld [vmem:[#allocation8 + $0x10] sm:$0xf]
    %v320 = vld [vmem:[#allocation8 + $0x14] sm:$0xf]
    %v321 = vld [vmem:[#allocation8 + $0x18] sm:$0xf]
    %v322 = vld [vmem:[#allocation8 + $0x1c] sm:$0xf]
    %v323 = vld [vmem:[#allocation6] sm:$0xf]
    %v324 = vld [vmem:[#allocation6 + $0x4] sm:$0xf]
    %vm325 = vcmp.gt.bf16.partialorder %v323, 0
    %vm326 = vcmp.gt.bf16.partialorder %v324, 0
    %v327 = vpack.c.bf16 %v195, %v195
    %v328 = vpack.c.bf16 %v198, %v198
    %v329 = vpack.c.bf16 %v252, %v252
    %v330 = vpack.c.bf16 %v255, %v255
    %v331 = vpack.c.bf16 %v309, %v309
    %v332 = vpack.c.bf16 %v312, %v312
    %vm333 = vcmask 64512
    %v335 = vsel %vm333, %v327, 0
    %v338 = vsel %vm333, %v329, 0
    %340 = vmatprep.subr.bf16.mxu0 0
    %341 = vmatpush1.bf16.xpose.msra.mxu0 0
    %342 = vmatprep.subr.bf16.mxu0 0
    %343 = vmatpush1.bf16.xpose.msra.mxu0 0
    %344 = vmatprep.subr.bf16.mxu0 0
    %345 = vmatpush1.bf16.xpose.msra.mxu0 0
    %346 = vmatprep.subr.bf16.mxu0 0
    %347 = vmatpush1.bf16.xpose.msra.mxu0 0
    %348 = vmatprep.subr.bf16.mxu0 0
    %349 = vmatpush1.bf16.xpose.msra.mxu0 0
    %350 = vmatprep.subr.bf16.mxu0 0
    %351 = vmatpush1.bf16.xpose.msra.mxu0 0
    %352 = vmatprep.subr.bf16.mxu0 0
    %353 = vmatpush1.bf16.xpose.msra.mxu0 0
    %354 = vmatprep.subr.bf16.mxu0 0
    %355 = vmatpush1.bf16.xpose.msra.mxu0 %v338
    %356 = vmatprep.subr.bf16.mxu0 0
    %357 = vmatpush2.bf16.xpose.msra.mxu0 0
    %358 = vmatprep.subr.bf16.mxu0 0
    %359 = vmatpush2.bf16.xpose.msra.mxu0 0
    %360 = vmatprep.subr.bf16.mxu0 0
    %361 = vmatpush2.bf16.xpose.msra.mxu0 0
    %362 = vmatprep.subr.bf16.mxu0 0
    %363 = vmatpush2.bf16.xpose.msra.mxu0 0
    %364 = vmatprep.subr.bf16.mxu0 0
    %365 = vmatpush2.bf16.xpose.msra.mxu0 0
    %366 = vmatprep.subr.bf16.mxu0 0
    %367 = vmatpush2.bf16.xpose.msra.mxu0 0
    %368 = vmatprep.subr.bf16.mxu0 0
    %369 = vmatpush2.bf16.xpose.msra.mxu0 0
    %370 = vmatprep.subr.bf16.mxu0 0
    %371 = vmatpush2.bf16.xpose.msra.mxu0 0
    %372 = vmatprep.mubr.bf16.mxu0 0
    %373 = vmatmul.mubr.bf16.gmra.mxu0 %v335
    %v374 = vpop.f32.mrf.mxu0
    %v375 = vadd.f32 0.0, %v374
    %v376 = vpop.f32.mrf.mxu0
    %v377 = vpop.f32.mrf.mxu0
    %v378 = vpop.f32.mrf.mxu0
    %379 = vdwg.mxu0
    %v381 = vsel %vm333, %v328, 0
    %v384 = vsel %vm333, %v330, 0
    %386 = vmatprep.subr.bf16.mxu0 0
    %387 = vmatpush1.bf16.xpose.msra.mxu0 0
    %388 = vmatprep.subr.bf16.mxu0 0
    %389 = vmatpush1.bf16.xpose.msra.mxu0 0
    %390 = vmatprep.subr.bf16.mxu0 0
    %391 = vmatpush1.bf16.xpose.msra.mxu0 0
    %392 = vmatprep.subr.bf16.mxu0 0
    %393 = vmatpush1.bf16.xpose.msra.mxu0 0
    %394 = vmatprep.subr.bf16.mxu0 0
    %395 = vmatpush1.bf16.xpose.msra.mxu0 0
    %396 = vmatprep.subr.bf16.mxu0 0
    %397 = vmatpush1.bf16.xpose.msra.mxu0 0
    %398 = vmatprep.subr.bf16.mxu0 0
    %399 = vmatpush1.bf16.xpose.msra.mxu0 0
    %400 = vmatprep.subr.bf16.mxu0 0
    %401 = vmatpush1.bf16.xpose.msra.mxu0 %v384
    %402 = vmatprep.subr.bf16.mxu0 0
    %403 = vmatpush2.bf16.xpose.msra.mxu0 0
    %404 = vmatprep.subr.bf16.mxu0 0
    %405 = vmatpush2.bf16.xpose.msra.mxu0 0
    %406 = vmatprep.subr.bf16.mxu0 0
    %407 = vmatpush2.bf16.xpose.msra.mxu0 0
    %408 = vmatprep.subr.bf16.mxu0 0
    %409 = vmatpush2.bf16.xpose.msra.mxu0 0
    %410 = vmatprep.subr.bf16.mxu0 0
    %411 = vmatpush2.bf16.xpose.msra.mxu0 0
    %412 = vmatprep.subr.bf16.mxu0 0
    %413 = vmatpush2.bf16.xpose.msra.mxu0 0
    %414 = vmatprep.subr.bf16.mxu0 0
    %415 = vmatpush2.bf16.xpose.msra.mxu0 0
    %416 = vmatprep.subr.bf16.mxu0 0
    %417 = vmatpush2.bf16.xpose.msra.mxu0 0
    %418 = vmatprep.mubr.bf16.mxu0 0
    %419 = vmatmul.mubr.bf16.gmra.mxu0 %v381
    %v420 = vpop.f32.mrf.mxu0
    %v421 = vadd.f32 0.0, %v420
    %v422 = vpop.f32.mrf.mxu0
    %v423 = vpop.f32.mrf.mxu0
    %v424 = vpop.f32.mrf.mxu0
    %425 = vdwg.mxu0
    %v426 = vunpack.c.l.bf16 %v315
    %v427 = vunpack.c.l.bf16 %v319
    %v428 = vmul.f32 %v375, %v426
    %v429 = vmul.f32 %v421, %v427
    %v430 = vsel %vm325, 65537, 0
    %v431 = vsel %vm326, 65537, 0
    %v432 = vunpack.c.l.b16 %v430
    %v433 = vunpack.c.l.b16 %v431
    %vm434 = vcmp.ne.s32.totalorder %v432, 0
    %vm435 = vcmp.ne.s32.totalorder %v433, 0
    %v436 = vsel %vm434, -1e+09, %v428
    %v437 = vsel %vm435, -1e+09, %v429
    %v438 = vsel %vm333, %v436, -inf
    %439 = vmax.xlane.f32.xlu0 %v438
    %v440 = vpop.xlane.xlu0 %439
    %v441 = vsel %vm333, %v437, -inf
    %442 = vmax.xlane.f32.xlu0 %v441
    %v443 = vpop.xlane.xlu0 %442
    %v444 = vsub.f32 %v436, %v440
    %v445 = vsub.f32 %v437, %v443
    %v446 = vmul.f32 %v444, 1.442695
    %v447 = vpow.pop %v446
    %v448 = vmul.f32 %v445, 1.442695
    %v449 = vpow.pop %v448
    %v450 = vsel %vm333, %v447, 0.0
    %451 = vadd.xlane.f32.xlu0 %v450
    %v452 = vpop.xlane.xlu0 %451
    %v453 = vsel %vm333, %v449, 0.0
    %454 = vadd.xlane.f32.xlu0 %v453
    %v455 = vpop.xlane.xlu0 %454
    %v456 = vrcp.pop %v452
    %v457 = vmul.f32 %v447, %v456
    %v458 = vrcp.pop %v455
    %v459 = vmul.f32 %v449, %v458
    %v460 = vpack.c.bf16 %v457, %v457
    %v461 = vpack.c.bf16 %v459, %v459
    %v463 = vsel %vm333, %v460, 0
    %vm465 = vcmask 1043456
    %v467 = vsel %vm465, %v331, 0
    %469 = vmatprep.subr.bf16.mxu0 0
    %470 = vmatpush1.bf16.msra.mxu0 0
    %471 = vmatprep.subr.bf16.mxu0 0
    %472 = vmatpush1.bf16.msra.mxu0 0
    %473 = vmatprep.subr.bf16.mxu0 0
    %474 = vmatpush1.bf16.msra.mxu0 0
    %475 = vmatprep.subr.bf16.mxu0 0
    %476 = vmatpush1.bf16.msra.mxu0 0
    %477 = vmatprep.subr.bf16.mxu0 0
    %478 = vmatpush1.bf16.msra.mxu0 0
    %479 = vmatprep.subr.bf16.mxu0 0
    %480 = vmatpush1.bf16.msra.mxu0 0
    %481 = vmatprep.subr.bf16.mxu0 0
    %482 = vmatpush1.bf16.msra.mxu0 0
    %483 = vmatprep.subr.bf16.mxu0 0
    %484 = vmatpush1.bf16.msra.mxu0 %v467
    %485 = vmatprep.subr.bf16.mxu0 0
    %486 = vmatpush2.bf16.msra.mxu0 0
    %487 = vmatprep.subr.bf16.mxu0 0
    %488 = vmatpush2.bf16.msra.mxu0 0
    %489 = vmatprep.subr.bf16.mxu0 0
    %490 = vmatpush2.bf16.msra.mxu0 0
    %491 = vmatprep.subr.bf16.mxu0 0
    %492 = vmatpush2.bf16.msra.mxu0 0
    %493 = vmatprep.subr.bf16.mxu0 0
    %494 = vmatpush2.bf16.msra.mxu0 0
    %495 = vmatprep.subr.bf16.mxu0 0
    %496 = vmatpush2.bf16.msra.mxu0 0
    %497 = vmatprep.subr.bf16.mxu0 0
    %498 = vmatpush2.bf16.msra.mxu0 0
    %499 = vmatprep.subr.bf16.mxu0 0
    %500 = vmatpush2.bf16.msra.mxu0 0
    %501 = vmatprep.mubr.bf16.mxu0 0
    %502 = vmatmul.mubr.bf16.gmra.mxu0 %v463
    %v503 = vpop.f32.mrf.mxu0
    %v504 = vadd.f32 0.0, %v503
    %v505 = vpop.f32.mrf.mxu0
    %v506 = vpop.f32.mrf.mxu0
    %v507 = vpop.f32.mrf.mxu0
    %508 = vdwg.mxu0
    %v510 = vsel %vm333, %v461, 0
    %v513 = vsel %vm465, %v332, 0
    %515 = vmatprep.subr.bf16.mxu0 0
    %516 = vmatpush1.bf16.msra.mxu0 0
    %517 = vmatprep.subr.bf16.mxu0 0
    %518 = vmatpush1.bf16.msra.mxu0 0
    %519 = vmatprep.subr.bf16.mxu0 0
    %520 = vmatpush1.bf16.msra.mxu0 0
    %521 = vmatprep.subr.bf16.mxu0 0
    %522 = vmatpush1.bf16.msra.mxu0 0
    %523 = vmatprep.subr.bf16.mxu0 0
    %524 = vmatpush1.bf16.msra.mxu0 0
    %525 = vmatprep.subr.bf16.mxu0 0
    %526 = vmatpush1.bf16.msra.mxu0 0
    %527 = vmatprep.subr.bf16.mxu0 0
    %528 = vmatpush1.bf16.msra.mxu0 0
    %529 = vmatprep.subr.bf16.mxu0 0
    %530 = vmatpush1.bf16.msra.mxu0 %v513
    %531 = vmatprep.subr.bf16.mxu0 0
    %532 = vmatpush2.bf16.msra.mxu0 0
    %533 = vmatprep.subr.bf16.mxu0 0
    %534 = vmatpush2.bf16.msra.mxu0 0
    %535 = vmatprep.subr.bf16.mxu0 0
    %536 = vmatpush2.bf16.msra.mxu0 0
    %537 = vmatprep.subr.bf16.mxu0 0
    %538 = vmatpush2.bf16.msra.mxu0 0
    %539 = vmatprep.subr.bf16.mxu0 0
    %540 = vmatpush2.bf16.msra.mxu0 0
    %541 = vmatprep.subr.bf16.mxu0 0
    %542 = vmatpush2.bf16.msra.mxu0 0
    %543 = vmatprep.subr.bf16.mxu0 0
    %544 = vmatpush2.bf16.msra.mxu0 0
    %545 = vmatprep.subr.bf16.mxu0 0
    %546 = vmatpush2.bf16.msra.mxu0 0
    %547 = vmatprep.mubr.bf16.mxu0 0
    %548 = vmatmul.mubr.bf16.gmra.mxu0 %v510
    %v549 = vpop.f32.mrf.mxu0
    %v550 = vadd.f32 0.0, %v549
    %v551 = vpop.f32.mrf.mxu0
    %v552 = vpop.f32.mrf.mxu0
    %v553 = vpop.f32.mrf.mxu0
    %554 = vdwg.mxu0
    %555 = vst.msk [vmem:[#allocation2] sm:$0xff] %vm333, %v504
    %556 = vst.msk [vmem:[#allocation2 + $0x8] sm:$0xff] %vm333, %v550
    %558 = vrot.lane.b32.xlu0 %v327, 120
    %v559 = vpop.permute.xlu0 %558
    %561 = vrot.lane.b32.xlu0 %v329, 120
    %v562 = vpop.permute.xlu0 %561
    %v564 = vsel %vm333, %v559, 0
    %v567 = vsel %vm333, %v562, 0
    %569 = vmatprep.subr.bf16.mxu0 0
    %570 = vmatpush1.bf16.xpose.msra.mxu0 0
    %571 = vmatprep.subr.bf16.mxu0 0
    %572 = vmatpush1.bf16.xpose.msra.mxu0 0
    %573 = vmatprep.subr.bf16.mxu0 0
    %574 = vmatpush1.bf16.xpose.msra.mxu0 0
    %575 = vmatprep.subr.bf16.mxu0 0
    %576 = vmatpush1.bf16.xpose.msra.mxu0 0
    %577 = vmatprep.subr.bf16.mxu0 0
    %578 = vmatpush1.bf16.xpose.msra.mxu0 0
    %579 = vmatprep.subr.bf16.mxu0 0
    %580 = vmatpush1.bf16.xpose.msra.mxu0 0
    %581 = vmatprep.subr.bf16.mxu0 0
    %582 = vmatpush1.bf16.xpose.msra.mxu0 0
    %583 = vmatprep.subr.bf16.mxu0 0
    %584 = vmatpush1.bf16.xpose.msra.mxu0 %v567
    %585 = vmatprep.subr.bf16.mxu0 0
    %586 = vmatpush2.bf16.xpose.msra.mxu0 0
    %587 = vmatprep.subr.bf16.mxu0 0
    %588 = vmatpush2.bf16.xpose.msra.mxu0 0
    %589 = vmatprep.subr.bf16.mxu0 0
    %590 = vmatpush2.bf16.xpose.msra.mxu0 0
    %591 = vmatprep.subr.bf16.mxu0 0
    %592 = vmatpush2.bf16.xpose.msra.mxu0 0
    %593 = vmatprep.subr.bf16.mxu0 0
    %594 = vmatpush2.bf16.xpose.msra.mxu0 0
    %595 = vmatprep.subr.bf16.mxu0 0
    %596 = vmatpush2.bf16.xpose.msra.mxu0 0
    %597 = vmatprep.subr.bf16.mxu0 0
    %598 = vmatpush2.bf16.xpose.msra.mxu0 0
    %599 = vmatprep.subr.bf16.mxu0 0
    %600 = vmatpush2.bf16.xpose.msra.mxu0 0
    %601 = vmatprep.mubr.bf16.mxu0 0
    %602 = vmatmul.mubr.bf16.gmra.mxu0 %v564
    %v603 = vpop.f32.mrf.mxu0
    %v604 = vadd.f32 0.0, %v603
    %v605 = vpop.f32.mrf.mxu0
    %v606 = vpop.f32.mrf.mxu0
    %v607 = vpop.f32.mrf.mxu0
    %608 = vdwg.mxu0
    %610 = vrot.lane.b32.xlu0 %v328, 120
    %v611 = vpop.permute.xlu0 %610
    %613 = vrot.lane.b32.xlu0 %v330, 120
    %v614 = vpop.permute.xlu0 %613
    %v616 = vsel %vm333, %v611, 0
    %v619 = vsel %vm333, %v614, 0
    %621 = vmatprep.subr.bf16.mxu0 0
    %622 = vmatpush1.bf16.xpose.msra.mxu0 0
    %623 = vmatprep.subr.bf16.mxu0 0
    %624 = vmatpush1.bf16.xpose.msra.mxu0 0
    %625 = vmatprep.subr.bf16.mxu0 0
    %626 = vmatpush1.bf16.xpose.msra.mxu0 0
    %627 = vmatprep.subr.bf16.mxu0 0
    %628 = vmatpush1.bf16.xpose.msra.mxu0 0
    %629 = vmatprep.subr.bf16.mxu0 0
    %630 = vmatpush1.bf16.xpose.msra.mxu0 0
    %631 = vmatprep.subr.bf16.mxu0 0
    %632 = vmatpush1.bf16.xpose.msra.mxu0 0
    %633 = vmatprep.subr.bf16.mxu0 0
    %634 = vmatpush1.bf16.xpose.msra.mxu0 0
    %635 = vmatprep.subr.bf16.mxu0 0
    %636 = vmatpush1.bf16.xpose.msra.mxu0 %v619
    %637 = vmatprep.subr.bf16.mxu0 0
    %638 = vmatpush2.bf16.xpose.msra.mxu0 0
    %639 = vmatprep.subr.bf16.mxu0 0
    %640 = vmatpush2.bf16.xpose.msra.mxu0 0
    %641 = vmatprep.subr.bf16.mxu0 0
    %642 = vmatpush2.bf16.xpose.msra.mxu0 0
    %643 = vmatprep.subr.bf16.mxu0 0
    %644 = vmatpush2.bf16.xpose.msra.mxu0 0
    %645 = vmatprep.subr.bf16.mxu0 0
    %646 = vmatpush2.bf16.xpose.msra.mxu0 0
    %647 = vmatprep.subr.bf16.mxu0 0
    %648 = vmatpush2.bf16.xpose.msra.mxu0 0
    %649 = vmatprep.subr.bf16.mxu0 0
    %650 = vmatpush2.bf16.xpose.msra.mxu0 0
    %651 = vmatprep.subr.bf16.mxu0 0
    %652 = vmatpush2.bf16.xpose.msra.mxu0 0
    %653 = vmatprep.mubr.bf16.mxu0 0
    %654 = vmatmul.mubr.bf16.gmra.mxu0 %v616
    %v655 = vpop.f32.mrf.mxu0
    %v656 = vadd.f32 0.0, %v655
    %v657 = vpop.f32.mrf.mxu0
    %v658 = vpop.f32.mrf.mxu0
    %v659 = vpop.f32.mrf.mxu0
    %660 = vdwg.mxu0
    %v661 = vunpack.c.l.bf16 %v316
    %v662 = vunpack.c.l.bf16 %v320
    %v663 = vmul.f32 %v604, %v661
    %v664 = vmul.f32 %v656, %v662
    %v665 = vsel %vm434, -1e+09, %v663
    %v666 = vsel %vm435, -1e+09, %v664
    %v667 = vsel %vm333, %v665, -inf
    %668 = vmax.xlane.f32.xlu0 %v667
    %v669 = vpop.xlane.xlu0 %668
    %v670 = vsel %vm333, %v666, -inf
    %671 = vmax.xlane.f32.xlu0 %v670
    %v672 = vpop.xlane.xlu0 %671
    %v673 = vsub.f32 %v665, %v669
    %v674 = vsub.f32 %v666, %v672
    %v675 = vmul.f32 %v673, 1.442695
    %v676 = vpow.pop %v675
    %v677 = vmul.f32 %v674, 1.442695
    %v678 = vpow.pop %v677
    %v679 = vsel %vm333, %v676, 0.0
    %680 = vadd.xlane.f32.xlu0 %v679
    %v681 = vpop.xlane.xlu0 %680
    %v682 = vsel %vm333, %v678, 0.0
    %683 = vadd.xlane.f32.xlu0 %v682
    %v684 = vpop.xlane.xlu0 %683
    %v685 = vrcp.pop %v681
    %v686 = vmul.f32 %v676, %v685
    %v687 = vrcp.pop %v684
    %v688 = vmul.f32 %v678, %v687
    %v689 = vpack.c.bf16 %v686, %v686
    %v690 = vpack.c.bf16 %v688, %v688
    %692 = vrot.lane.b32.xlu0 %v331, 120
    %v693 = vpop.permute.xlu0 %692
    %v695 = vsel %vm333, %v689, 0
    %v698 = vsel %vm465, %v693, 0
    %700 = vmatprep.subr.bf16.mxu0 0
    %701 = vmatpush1.bf16.msra.mxu0 0
    %702 = vmatprep.subr.bf16.mxu0 0
    %703 = vmatpush1.bf16.msra.mxu0 0
    %704 = vmatprep.subr.bf16.mxu0 0
    %705 = vmatpush1.bf16.msra.mxu0 0
    %706 = vmatprep.subr.bf16.mxu0 0
    %707 = vmatpush1.bf16.msra.mxu0 0
    %708 = vmatprep.subr.bf16.mxu0 0
    %709 = vmatpush1.bf16.msra.mxu0 0
    %710 = vmatprep.subr.bf16.mxu0 0
    %711 = vmatpush1.bf16.msra.mxu0 0
    %712 = vmatprep.subr.bf16.mxu0 0
    %713 = vmatpush1.bf16.msra.mxu0 0
    %714 = vmatprep.subr.bf16.mxu0 0
    %715 = vmatpush1.bf16.msra.mxu0 %v698
    %716 = vmatprep.subr.bf16.mxu0 0
    %717 = vmatpush2.bf16.msra.mxu0 0
    %718 = vmatprep.subr.bf16.mxu0 0
    %719 = vmatpush2.bf16.msra.mxu0 0
    %720 = vmatprep.subr.bf16.mxu0 0
    %721 = vmatpush2.bf16.msra.mxu0 0
    %722 = vmatprep.subr.bf16.mxu0 0
    %723 = vmatpush2.bf16.msra.mxu0 0
    %724 = vmatprep.subr.bf16.mxu0 0
    %725 = vmatpush2.bf16.msra.mxu0 0
    %726 = vmatprep.subr.bf16.mxu0 0
    %727 = vmatpush2.bf16.msra.mxu0 0
    %728 = vmatprep.subr.bf16.mxu0 0
    %729 = vmatpush2.bf16.msra.mxu0 0
    %730 = vmatprep.subr.bf16.mxu0 0
    %731 = vmatpush2.bf16.msra.mxu0 0
    %732 = vmatprep.mubr.bf16.mxu0 0
    %733 = vmatmul.mubr.bf16.gmra.mxu0 %v695
    %v734 = vpop.f32.mrf.mxu0
    %v735 = vadd.f32 0.0, %v734
    %v736 = vpop.f32.mrf.mxu0
    %v737 = vpop.f32.mrf.mxu0
    %v738 = vpop.f32.mrf.mxu0
    %739 = vdwg.mxu0
    %741 = vrot.lane.b32.xlu0 %v332, 120
    %v742 = vpop.permute.xlu0 %741
    %v744 = vsel %vm333, %v690, 0
    %v747 = vsel %vm465, %v742, 0
    %749 = vmatprep.subr.bf16.mxu0 0
    %750 = vmatpush1.bf16.msra.mxu0 0
    %751 = vmatprep.subr.bf16.mxu0 0
    %752 = vmatpush1.bf16.msra.mxu0 0
    %753 = vmatprep.subr.bf16.mxu0 0
    %754 = vmatpush1.bf16.msra.mxu0 0
    %755 = vmatprep.subr.bf16.mxu0 0
    %756 = vmatpush1.bf16.msra.mxu0 0
    %757 = vmatprep.subr.bf16.mxu0 0
    %758 = vmatpush1.bf16.msra.mxu0 0
    %759 = vmatprep.subr.bf16.mxu0 0
    %760 = vmatpush1.bf16.msra.mxu0 0
    %761 = vmatprep.subr.bf16.mxu0 0
    %762 = vmatpush1.bf16.msra.mxu0 0
    %763 = vmatprep.subr.bf16.mxu0 0
    %764 = vmatpush1.bf16.msra.mxu0 %v747
    %765 = vmatprep.subr.bf16.mxu0 0
    %766 = vmatpush2.bf16.msra.mxu0 0
    %767 = vmatprep.subr.bf16.mxu0 0
    %768 = vmatpush2.bf16.msra.mxu0 0
    %769 = vmatprep.subr.bf16.mxu0 0
    %770 = vmatpush2.bf16.msra.mxu0 0
    %771 = vmatprep.subr.bf16.mxu0 0
    %772 = vmatpush2.bf16.msra.mxu0 0
    %773 = vmatprep.subr.bf16.mxu0 0
    %774 = vmatpush2.bf16.msra.mxu0 0
    %775 = vmatprep.subr.bf16.mxu0 0
    %776 = vmatpush2.bf16.msra.mxu0 0
    %777 = vmatprep.subr.bf16.mxu0 0
    %778 = vmatpush2.bf16.msra.mxu0 0
    %779 = vmatprep.subr.bf16.mxu0 0
    %780 = vmatpush2.bf16.msra.mxu0 0
    %781 = vmatprep.mubr.bf16.mxu0 0
    %782 = vmatmul.mubr.bf16.gmra.mxu0 %v744
    %v783 = vpop.f32.mrf.mxu0
    %v784 = vadd.f32 0.0, %v783
    %v785 = vpop.f32.mrf.mxu0
    %v786 = vpop.f32.mrf.mxu0
    %v787 = vpop.f32.mrf.mxu0
    %788 = vdwg.mxu0
    %791 = vrot.lane.b32.xlu0 %v735, 8
    %v792 = vpop.permute.xlu0 %791
    %793 = vrot.lane.b32.xlu0 %v784, 8
    %v794 = vpop.permute.xlu0 %793
    %vm797 = vcmask 130112
    %798 = vst.msk [vmem:[#allocation2] sm:$0xff] %vm797, %v792
    %799 = vst.msk [vmem:[#allocation2 + $0x8] sm:$0xff] %vm797, %v794
    %800 = vrot.lane.b32.xlu0 %v327, 112
    %v801 = vpop.permute.xlu0 %800
    %802 = vrot.lane.b32.xlu0 %v329, 112
    %v803 = vpop.permute.xlu0 %802
    %v805 = vsel %vm333, %v801, 0
    %v808 = vsel %vm333, %v803, 0
    %810 = vmatprep.subr.bf16.mxu0 0
    %811 = vmatpush1.bf16.xpose.msra.mxu0 0
    %812 = vmatprep.subr.bf16.mxu0 0
    %813 = vmatpush1.bf16.xpose.msra.mxu0 0
    %814 = vmatprep.subr.bf16.mxu0 0
    %815 = vmatpush1.bf16.xpose.msra.mxu0 0
    %816 = vmatprep.subr.bf16.mxu0 0
    %817 = vmatpush1.bf16.xpose.msra.mxu0 0
    %818 = vmatprep.subr.bf16.mxu0 0
    %819 = vmatpush1.bf16.xpose.msra.mxu0 0
    %820 = vmatprep.subr.bf16.mxu0 0
    %821 = vmatpush1.bf16.xpose.msra.mxu0 0
    %822 = vmatprep.subr.bf16.mxu0 0
    %823 = vmatpush1.bf16.xpose.msra.mxu0 0
    %824 = vmatprep.subr.bf16.mxu0 0
    %825 = vmatpush1.bf16.xpose.msra.mxu0 %v808
    %826 = vmatprep.subr.bf16.mxu0 0
    %827 = vmatpush2.bf16.xpose.msra.mxu0 0
    %828 = vmatprep.subr.bf16.mxu0 0
    %829 = vmatpush2.bf16.xpose.msra.mxu0 0
    %830 = vmatprep.subr.bf16.mxu0 0
    %831 = vmatpush2.bf16.xpose.msra.mxu0 0
    %832 = vmatprep.subr.bf16.mxu0 0
    %833 = vmatpush2.bf16.xpose.msra.mxu0 0
    %834 = vmatprep.subr.bf16.mxu0 0
    %835 = vmatpush2.bf16.xpose.msra.mxu0 0
    %836 = vmatprep.subr.bf16.mxu0 0
    %837 = vmatpush2.bf16.xpose.msra.mxu0 0
    %838 = vmatprep.subr.bf16.mxu0 0
    %839 = vmatpush2.bf16.xpose.msra.mxu0 0
    %840 = vmatprep.subr.bf16.mxu0 0
    %841 = vmatpush2.bf16.xpose.msra.mxu0 0
    %842 = vmatprep.mubr.bf16.mxu0 0
    %843 = vmatmul.mubr.bf16.gmra.mxu0 %v805
    %v844 = vpop.f32.mrf.mxu0
    %v845 = vadd.f32 0.0, %v844
    %v846 = vpop.f32.mrf.mxu0
    %v847 = vpop.f32.mrf.mxu0
    %v848 = vpop.f32.mrf.mxu0
    %849 = vdwg.mxu0
    %850 = vrot.lane.b32.xlu0 %v328, 112
    %v851 = vpop.permute.xlu0 %850
    %852 = vrot.lane.b32.xlu0 %v330, 112
    %v853 = vpop.permute.xlu0 %852
    %v855 = vsel %vm333, %v851, 0
    %v858 = vsel %vm333, %v853, 0
    %860 = vmatprep.subr.bf16.mxu0 0
    %861 = vmatpush1.bf16.xpose.msra.mxu0 0
    %862 = vmatprep.subr.bf16.mxu0 0
    %863 = vmatpush1.bf16.xpose.msra.mxu0 0
    %864 = vmatprep.subr.bf16.mxu0 0
    %865 = vmatpush1.bf16.xpose.msra.mxu0 0
    %866 = vmatprep.subr.bf16.mxu0 0
    %867 = vmatpush1.bf16.xpose.msra.mxu0 0
    %868 = vmatprep.subr.bf16.mxu0 0
    %869 = vmatpush1.bf16.xpose.msra.mxu0 0
    %870 = vmatprep.subr.bf16.mxu0 0
    %871 = vmatpush1.bf16.xpose.msra.mxu0 0
    %872 = vmatprep.subr.bf16.mxu0 0
    %873 = vmatpush1.bf16.xpose.msra.mxu0 0
    %874 = vmatprep.subr.bf16.mxu0 0
    %875 = vmatpush1.bf16.xpose.msra.mxu0 %v858
    %876 = vmatprep.subr.bf16.mxu0 0
    %877 = vmatpush2.bf16.xpose.msra.mxu0 0
    %878 = vmatprep.subr.bf16.mxu0 0
    %879 = vmatpush2.bf16.xpose.msra.mxu0 0
    %880 = vmatprep.subr.bf16.mxu0 0
    %881 = vmatpush2.bf16.xpose.msra.mxu0 0
    %882 = vmatprep.subr.bf16.mxu0 0
    %883 = vmatpush2.bf16.xpose.msra.mxu0 0
    %884 = vmatprep.subr.bf16.mxu0 0
    %885 = vmatpush2.bf16.xpose.msra.mxu0 0
    %886 = vmatprep.subr.bf16.mxu0 0
    %887 = vmatpush2.bf16.xpose.msra.mxu0 0
    %888 = vmatprep.subr.bf16.mxu0 0
    %889 = vmatpush2.bf16.xpose.msra.mxu0 0
    %890 = vmatprep.subr.bf16.mxu0 0
    %891 = vmatpush2.bf16.xpose.msra.mxu0 0
    %892 = vmatprep.mubr.bf16.mxu0 0
    %893 = vmatmul.mubr.bf16.gmra.mxu0 %v855
    %v894 = vpop.f32.mrf.mxu0
    %v895 = vadd.f32 0.0, %v894
    %v896 = vpop.f32.mrf.mxu0
    %v897 = vpop.f32.mrf.mxu0
    %v898 = vpop.f32.mrf.mxu0
    %899 = vdwg.mxu0
    %v900 = vunpack.c.l.bf16 %v317
    %v901 = vunpack.c.l.bf16 %v321
    %v902 = vmul.f32 %v845, %v900
    %v903 = vmul.f32 %v895, %v901
    %v904 = vsel %vm434, -1e+09, %v902
    %v905 = vsel %vm435, -1e+09, %v903
    %v906 = vsel %vm333, %v904, -inf
    %907 = vmax.xlane.f32.xlu0 %v906
    %v908 = vpop.xlane.xlu0 %907
    %v909 = vsel %vm333, %v905, -inf
    %910 = vmax.xlane.f32.xlu0 %v909
    %v911 = vpop.xlane.xlu0 %910
    %v912 = vsub.f32 %v904, %v908
    %v913 = vsub.f32 %v905, %v911
    %v914 = vmul.f32 %v912, 1.442695
    %v915 = vpow.pop %v914
    %v916 = vmul.f32 %v913, 1.442695
    %v917 = vpow.pop %v916
    %v918 = vsel %vm333, %v915, 0.0
    %919 = vadd.xlane.f32.xlu0 %v918
    %v920 = vpop.xlane.xlu0 %919
    %v921 = vsel %vm333, %v917, 0.0
    %922 = vadd.xlane.f32.xlu0 %v921
    %v923 = vpop.xlane.xlu0 %922
    %v924 = vrcp.pop %v920
    %v925 = vmul.f32 %v915, %v924
    %v926 = vrcp.pop %v923
    %v927 = vmul.f32 %v917, %v926
    %v928 = vpack.c.bf16 %v925, %v925
    %v929 = vpack.c.bf16 %v927, %v927
    %930 = vrot.lane.b32.xlu0 %v331, 112
    %v931 = vpop.permute.xlu0 %930
    %v933 = vsel %vm333, %v928, 0
    %v936 = vsel %vm465, %v931, 0
    %938 = vmatprep.subr.bf16.mxu0 0
    %939 = vmatpush1.bf16.msra.mxu0 0
    %940 = vmatprep.subr.bf16.mxu0 0
    %941 = vmatpush1.bf16.msra.mxu0 0
    %942 = vmatprep.subr.bf16.mxu0 0
    %943 = vmatpush1.bf16.msra.mxu0 0
    %944 = vmatprep.subr.bf16.mxu0 0
    %945 = vmatpush1.bf16.msra.mxu0 0
    %946 = vmatprep.subr.bf16.mxu0 0
    %947 = vmatpush1.bf16.msra.mxu0 0
    %948 = vmatprep.subr.bf16.mxu0 0
    %949 = vmatpush1.bf16.msra.mxu0 0
    %950 = vmatprep.subr.bf16.mxu0 0
    %951 = vmatpush1.bf16.msra.mxu0 0
    %952 = vmatprep.subr.bf16.mxu0 0
    %953 = vmatpush1.bf16.msra.mxu0 %v936
    %954 = vmatprep.subr.bf16.mxu0 0
    %955 = vmatpush2.bf16.msra.mxu0 0
    %956 = vmatprep.subr.bf16.mxu0 0
    %957 = vmatpush2.bf16.msra.mxu0 0
    %958 = vmatprep.subr.bf16.mxu0 0
    %959 = vmatpush2.bf16.msra.mxu0 0
    %960 = vmatprep.subr.bf16.mxu0 0
    %961 = vmatpush2.bf16.msra.mxu0 0
    %962 = vmatprep.subr.bf16.mxu0 0
    %963 = vmatpush2.bf16.msra.mxu0 0
    %964 = vmatprep.subr.bf16.mxu0 0
    %965 = vmatpush2.bf16.msra.mxu0 0
    %966 = vmatprep.subr.bf16.mxu0 0
    %967 = vmatpush2.bf16.msra.mxu0 0
    %968 = vmatprep.subr.bf16.mxu0 0
    %969 = vmatpush2.bf16.msra.mxu0 0
    %970 = vmatprep.mubr.bf16.mxu0 0
    %971 = vmatmul.mubr.bf16.gmra.mxu0 %v933
    %v972 = vpop.f32.mrf.mxu0
    %v973 = vadd.f32 0.0, %v972
    %v974 = vpop.f32.mrf.mxu0
    %v975 = vpop.f32.mrf.mxu0
    %v976 = vpop.f32.mrf.mxu0
    %977 = vdwg.mxu0
    %978 = vrot.lane.b32.xlu0 %v332, 112
    %v979 = vpop.permute.xlu0 %978
    %v981 = vsel %vm333, %v929, 0
    %v984 = vsel %vm465, %v979, 0
    %986 = vmatprep.subr.bf16.mxu0 0
    %987 = vmatpush1.bf16.msra.mxu0 0
    %988 = vmatprep.subr.bf16.mxu0 0
    %989 = vmatpush1.bf16.msra.mxu0 0
    %990 = vmatprep.subr.bf16.mxu0 0
    %991 = vmatpush1.bf16.msra.mxu0 0
    %992 = vmatprep.subr.bf16.mxu0 0
    %993 = vmatpush1.bf16.msra.mxu0 0
    %994 = vmatprep.subr.bf16.mxu0 0
    %995 = vmatpush1.bf16.msra.mxu0 0
    %996 = vmatprep.subr.bf16.mxu0 0
    %997 = vmatpush1.bf16.msra.mxu0 0
    %998 = vmatprep.subr.bf16.mxu0 0
    %999 = vmatpush1.bf16.msra.mxu0 0
    %1000 = vmatprep.subr.bf16.mxu0 0
    %1001 = vmatpush1.bf16.msra.mxu0 %v984
    %1002 = vmatprep.subr.bf16.mxu0 0
    %1003 = vmatpush2.bf16.msra.mxu0 0
    %1004 = vmatprep.subr.bf16.mxu0 0
    %1005 = vmatpush2.bf16.msra.mxu0 0
    %1006 = vmatprep.subr.bf16.mxu0 0
    %1007 = vmatpush2.bf16.msra.mxu0 0
    %1008 = vmatprep.subr.bf16.mxu0 0
    %1009 = vmatpush2.bf16.msra.mxu0 0
    %1010 = vmatprep.subr.bf16.mxu0 0
    %1011 = vmatpush2.bf16.msra.mxu0 0
    %1012 = vmatprep.subr.bf16.mxu0 0
    %1013 = vmatpush2.bf16.msra.mxu0 0
    %1014 = vmatprep.subr.bf16.mxu0 0
    %1015 = vmatpush2.bf16.msra.mxu0 0
    %1016 = vmatprep.subr.bf16.mxu0 0
    %1017 = vmatpush2.bf16.msra.mxu0 0
    %1018 = vmatprep.mubr.bf16.mxu0 0
    %1019 = vmatmul.mubr.bf16.gmra.mxu0 %v981
    %v1020 = vpop.f32.mrf.mxu0
    %v1021 = vadd.f32 0.0, %v1020
    %v1022 = vpop.f32.mrf.mxu0
    %v1023 = vpop.f32.mrf.mxu0
    %v1024 = vpop.f32.mrf.mxu0
    %1025 = vdwg.mxu0
    %1028 = vrot.lane.b32.xlu0 %v973, 16
    %v1029 = vpop.permute.xlu0 %1028
    %1030 = vrot.lane.b32.xlu0 %v1021, 16
    %v1031 = vpop.permute.xlu0 %1030
    %vm1034 = vcmask 195712
    %1035 = vst.msk [vmem:[#allocation2] sm:$0xff] %vm1034, %v1029
    %1036 = vst.msk [vmem:[#allocation2 + $0x8] sm:$0xff] %vm1034, %v1031
    %1037 = vrot.lane.b32.xlu0 %v327, 104
    %v1038 = vpop.permute.xlu0 %1037
    %1039 = vrot.lane.b32.xlu0 %v329, 104
    %v1040 = vpop.permute.xlu0 %1039
    %v1042 = vsel %vm333, %v1038, 0
    %v1045 = vsel %vm333, %v1040, 0
    %1047 = vmatprep.subr.bf16.mxu0 0
    %1048 = vmatpush1.bf16.xpose.msra.mxu0 0
    %1049 = vmatprep.subr.bf16.mxu0 0
    %1050 = vmatpush1.bf16.xpose.msra.mxu0 0
    %1051 = vmatprep.subr.bf16.mxu0 0
    %1052 = vmatpush1.bf16.xpose.msra.mxu0 0
    %1053 = vmatprep.subr.bf16.mxu0 0
    %1054 = vmatpush1.bf16.xpose.msra.mxu0 0
    %1055 = vmatprep.subr.bf16.mxu0 0
    %1056 = vmatpush1.bf16.xpose.msra.mxu0 0
    %1057 = vmatprep.subr.bf16.mxu0 0
    %1058 = vmatpush1.bf16.xpose.msra.mxu0 0
    %1059 = vmatprep.subr.bf16.mxu0 0
    %1060 = vmatpush1.bf16.xpose.msra.mxu0 0
    %1061 = vmatprep.subr.bf16.mxu0 0
    %1062 = vmatpush1.bf16.xpose.msra.mxu0 %v1045
    %1063 = vmatprep.subr.bf16.mxu0 0
    %1064 = vmatpush2.bf16.xpose.msra.mxu0 0
    %1065 = vmatprep.subr.bf16.mxu0 0
    %1066 = vmatpush2.bf16.xpose.msra.mxu0 0
    %1067 = vmatprep.subr.bf16.mxu0 0
    %1068 = vmatpush2.bf16.xpose.msra.mxu0 0
    %1069 = vmatprep.subr.bf16.mxu0 0
    %1070 = vmatpush2.bf16.xpose.msra.mxu0 0
    %1071 = vmatprep.subr.bf16.mxu0 0
    %1072 = vmatpush2.bf16.xpose.msra.mxu0 0
    %1073 = vmatprep.subr.bf16.mxu0 0
    %1074 = vmatpush2.bf16.xpose.msra.mxu0 0
    %1075 = vmatprep.subr.bf16.mxu0 0
    %1076 = vmatpush2.bf16.xpose.msra.mxu0 0
    %1077 = vmatprep.subr.bf16.mxu0 0
    %1078 = vmatpush2.bf16.xpose.msra.mxu0 0
    %1079 = vmatprep.mubr.bf16.mxu0 0
    %1080 = vmatmul.mubr.bf16.gmra.mxu0 %v1042
    %v1081 = vpop.f32.mrf.mxu0
    %v1082 = vadd.f32 0.0, %v1081
    %v1083 = vpop.f32.mrf.mxu0
    %v1084 = vpop.f32.mrf.mxu0
    %v1085 = vpop.f32.mrf.mxu0
    %1086 = vdwg.mxu0
    %1087 = vrot.lane.b32.xlu0 %v328, 104
    %v1088 = vpop.permute.xlu0 %1087
    %1089 = vrot.lane.b32.xlu0 %v330, 104
    %v1090 = vpop.permute.xlu0 %1089
    %v1092 = vsel %vm333, %v1088, 0
    %v1095 = vsel %vm333, %v1090, 0
    %1097 = vmatprep.subr.bf16.mxu0 0
    %1098 = vmatpush1.bf16.xpose.msra.mxu0 0
    %1099 = vmatprep.subr.bf16.mxu0 0
    %1100 = vmatpush1.bf16.xpose.msra.mxu0 0
    %1101 = vmatprep.subr.bf16.mxu0 0
    %1102 = vmatpush1.bf16.xpose.msra.mxu0 0
    %1103 = vmatprep.subr.bf16.mxu0 0
    %1104 = vmatpush1.bf16.xpose.msra.mxu0 0
    %1105 = vmatprep.subr.bf16.mxu0 0
    %1106 = vmatpush1.bf16.xpose.msra.mxu0 0
    %1107 = vmatprep.subr.bf16.mxu0 0
    %1108 = vmatpush1.bf16.xpose.msra.mxu0 0
    %1109 = vmatprep.subr.bf16.mxu0 0
    %1110 = vmatpush1.bf16.xpose.msra.mxu0 0
    %1111 = vmatprep.subr.bf16.mxu0 0
    %1112 = vmatpush1.bf16.xpose.msra.mxu0 %v1095
    %1113 = vmatprep.subr.bf16.mxu0 0
    %1114 = vmatpush2.bf16.xpose.msra.mxu0 0
    %1115 = vmatprep.subr.bf16.mxu0 0
    %1116 = vmatpush2.bf16.xpose.msra.mxu0 0
    %1117 = vmatprep.subr.bf16.mxu0 0
    %1118 = vmatpush2.bf16.xpose.msra.mxu0 0
    %1119 = vmatprep.subr.bf16.mxu0 0
    %1120 = vmatpush2.bf16.xpose.msra.mxu0 0
    %1121 = vmatprep.subr.bf16.mxu0 0
    %1122 = vmatpush2.bf16.xpose.msra.mxu0 0
    %1123 = vmatprep.subr.bf16.mxu0 0
    %1124 = vmatpush2.bf16.xpose.msra.mxu0 0
    %1125 = vmatprep.subr.bf16.mxu0 0
    %1126 = vmatpush2.bf16.xpose.msra.mxu0 0
    %1127 = vmatprep.subr.bf16.mxu0 0
    %1128 = vmatpush2.bf16.xpose.msra.mxu0 0
    %1129 = vmatprep.mubr.bf16.mxu0 0
    %1130 = vmatmul.mubr.bf16.gmra.mxu0 %v1092
    %v1131 = vpop.f32.mrf.mxu0
    %v1132 = vadd.f32 0.0, %v1131
    %v1133 = vpop.f32.mrf.mxu0
    %v1134 = vpop.f32.mrf.mxu0
    %v1135 = vpop.f32.mrf.mxu0
    %1136 = vdwg.mxu0
    %v1137 = vunpack.c.l.bf16 %v318
    %v1138 = vunpack.c.l.bf16 %v322
    %v1139 = vmul.f32 %v1082, %v1137
    %v1140 = vmul.f32 %v1132, %v1138
    %v1141 = vsel %vm434, -1e+09, %v1139
    %v1142 = vsel %vm435, -1e+09, %v1140
    %v1143 = vsel %vm333, %v1141, -inf
    %1144 = vmax.xlane.f32.xlu0 %v1143
    %v1145 = vpop.xlane.xlu0 %1144
    %v1146 = vsel %vm333, %v1142, -inf
    %1147 = vmax.xlane.f32.xlu0 %v1146
    %v1148 = vpop.xlane.xlu0 %1147
    %v1149 = vsub.f32 %v1141, %v1145
    %v1150 = vsub.f32 %v1142, %v1148
    %v1151 = vmul.f32 %v1149, 1.442695
    %v1152 = vpow.pop %v1151
    %v1153 = vmul.f32 %v1150, 1.442695
    %v1154 = vpow.pop %v1153
    %v1155 = vsel %vm333, %v1152, 0.0
    %1156 = vadd.xlane.f32.xlu0 %v1155
    %v1157 = vpop.xlane.xlu0 %1156
    %v1158 = vsel %vm333, %v1154, 0.0
    %1159 = vadd.xlane.f32.xlu0 %v1158
    %v1160 = vpop.xlane.xlu0 %1159
    %v1161 = vrcp.pop %v1157
    %v1162 = vmul.f32 %v1152, %v1161
    %v1163 = vrcp.pop %v1160
    %v1164 = vmul.f32 %v1154, %v1163
    %v1165 = vpack.c.bf16 %v1162, %v1162
    %v1166 = vpack.c.bf16 %v1164, %v1164
    %1167 = vrot.lane.b32.xlu0 %v331, 104
    %v1168 = vpop.permute.xlu0 %1167
    %v1170 = vsel %vm333, %v1165, 0
    %v1173 = vsel %vm465, %v1168, 0
    %1175 = vmatprep.subr.bf16.mxu0 0
    %1176 = vmatpush1.bf16.msra.mxu0 0
    %1177 = vmatprep.subr.bf16.mxu0 0
    %1178 = vmatpush1.bf16.msra.mxu0 0
    %1179 = vmatprep.subr.bf16.mxu0 0
    %1180 = vmatpush1.bf16.msra.mxu0 0
    %1181 = vmatprep.subr.bf16.mxu0 0
    %1182 = vmatpush1.bf16.msra.mxu0 0
    %1183 = vmatprep.subr.bf16.mxu0 0
    %1184 = vmatpush1.bf16.msra.mxu0 0
    %1185 = vmatprep.subr.bf16.mxu0 0
    %1186 = vmatpush1.bf16.msra.mxu0 0
    %1187 = vmatprep.subr.bf16.mxu0 0
    %1188 = vmatpush1.bf16.msra.mxu0 0
    %1189 = vmatprep.subr.bf16.mxu0 0
    %1190 = vmatpush1.bf16.msra.mxu0 %v1173
    %1191 = vmatprep.subr.bf16.mxu0 0
    %1192 = vmatpush2.bf16.msra.mxu0 0
    %1193 = vmatprep.subr.bf16.mxu0 0
    %1194 = vmatpush2.bf16.msra.mxu0 0
    %1195 = vmatprep.subr.bf16.mxu0 0
    %1196 = vmatpush2.bf16.msra.mxu0 0
    %1197 = vmatprep.subr.bf16.mxu0 0
    %1198 = vmatpush2.bf16.msra.mxu0 0
    %1199 = vmatprep.subr.bf16.mxu0 0
    %1200 = vmatpush2.bf16.msra.mxu0 0
    %1201 = vmatprep.subr.bf16.mxu0 0
    %1202 = vmatpush2.bf16.msra.mxu0 0
    %1203 = vmatprep.subr.bf16.mxu0 0
    %1204 = vmatpush2.bf16.msra.mxu0 0
    %1205 = vmatprep.subr.bf16.mxu0 0
    %1206 = vmatpush2.bf16.msra.mxu0 0
    %1207 = vmatprep.mubr.bf16.mxu0 0
    %1208 = vmatmul.mubr.bf16.gmra.mxu0 %v1170
    %v1209 = vpop.f32.mrf.mxu0
    %v1210 = vadd.f32 0.0, %v1209
    %v1211 = vpop.f32.mrf.mxu0
    %v1212 = vpop.f32.mrf.mxu0
    %v1213 = vpop.f32.mrf.mxu0
    %1214 = vdwg.mxu0
    %1215 = vrot.lane.b32.xlu0 %v332, 104
    %v1216 = vpop.permute.xlu0 %1215
    %v1218 = vsel %vm333, %v1166, 0
    %v1221 = vsel %vm465, %v1216, 0
    %1223 = vmatprep.subr.bf16.mxu0 0
    %1224 = vmatpush1.bf16.msra.mxu0 0
    %1225 = vmatprep.subr.bf16.mxu0 0
    %1226 = vmatpush1.bf16.msra.mxu0 0
    %1227 = vmatprep.subr.bf16.mxu0 0
    %1228 = vmatpush1.bf16.msra.mxu0 0
    %1229 = vmatprep.subr.bf16.mxu0 0
    %1230 = vmatpush1.bf16.msra.mxu0 0
    %1231 = vmatprep.subr.bf16.mxu0 0
    %1232 = vmatpush1.bf16.msra.mxu0 0
    %1233 = vmatprep.subr.bf16.mxu0 0
    %1234 = vmatpush1.bf16.msra.mxu0 0
    %1235 = vmatprep.subr.bf16.mxu0 0
    %1236 = vmatpush1.bf16.msra.mxu0 0
    %1237 = vmatprep.subr.bf16.mxu0 0
    %1238 = vmatpush1.bf16.msra.mxu0 %v1221
    %1239 = vmatprep.subr.bf16.mxu0 0
    %1240 = vmatpush2.bf16.msra.mxu0 0
    %1241 = vmatprep.subr.bf16.mxu0 0
    %1242 = vmatpush2.bf16.msra.mxu0 0
    %1243 = vmatprep.subr.bf16.mxu0 0
    %1244 = vmatpush2.bf16.msra.mxu0 0
    %1245 = vmatprep.subr.bf16.mxu0 0
    %1246 = vmatpush2.bf16.msra.mxu0 0
    %1247 = vmatprep.subr.bf16.mxu0 0
    %1248 = vmatpush2.bf16.msra.mxu0 0
    %1249 = vmatprep.subr.bf16.mxu0 0
    %1250 = vmatpush2.bf16.msra.mxu0 0
    %1251 = vmatprep.subr.bf16.mxu0 0
    %1252 = vmatpush2.bf16.msra.mxu0 0
    %1253 = vmatprep.subr.bf16.mxu0 0
    %1254 = vmatpush2.bf16.msra.mxu0 0
    %1255 = vmatprep.mubr.bf16.mxu0 0
    %1256 = vmatmul.mubr.bf16.gmra.mxu0 %v1218
    %v1257 = vpop.f32.mrf.mxu0
    %v1258 = vadd.f32 0.0, %v1257
    %v1259 = vpop.f32.mrf.mxu0
    %v1260 = vpop.f32.mrf.mxu0
    %v1261 = vpop.f32.mrf.mxu0
    %1262 = vdwg.mxu0
    %1265 = vrot.lane.b32.xlu0 %v1210, 24
    %v1266 = vpop.permute.xlu0 %1265
    %1267 = vrot.lane.b32.xlu0 %v1258, 24
    %v1268 = vpop.permute.xlu0 %1267
    %vm1271 = vcmask 261312
    %1272 = vst.msk [vmem:[#allocation2] sm:$0xff] %vm1271, %v1266
    %1273 = vst.msk [vmem:[#allocation2 + $0x8] sm:$0xff] %vm1271, %v1268
    %v1274 = vld [vmem:[#allocation2] sm:$0xff]
    %v1275 = vld [vmem:[#allocation2 + $0x8] sm:$0xff]
    %v1276 = vpack.c.bf16 %v1275, %v1274
    %v1277 = vld [vmem:[#allocation14] sm:$0xf]
    %v1278 = vld [vmem:[#allocation14 + $0x4] sm:$0xf]
    %v1279 = vld [vmem:[#allocation14 + $0x8] sm:$0xf]
    %v1280 = vld [vmem:[#allocation14 + $0xc] sm:$0xf]
    %v1285 = vunpack.c.l.b16 %v1277
    %v1286 = vunpack.c.l.b16 %v1278
    %v1287 = vunpack.c.l.b16 %v1279
    %v1288 = vunpack.c.l.b16 %v1280
    %v1289 = vpack.c.b16 %v1286, %v1285
    %v1290 = vpack.c.b16 %v1288, %v1287
    %v1294 = vsel %vm156, %v1276, 0
    %1296 = vmatprep.subr.bf16.mxu0 0
    %1297 = vmatpush1.bf16.msra.mxu0 0
    %1298 = vmatprep.subr.bf16.mxu0 0
    %1299 = vmatpush1.bf16.msra.mxu0 0
    %1300 = vmatprep.subr.bf16.mxu0 0
    %1301 = vmatpush1.bf16.msra.mxu0 0
    %1302 = vmatprep.subr.bf16.mxu0 0
    %1303 = vmatpush1.bf16.msra.mxu0 0
    %1304 = vmatprep.subr.bf16.mxu0 0
    %1305 = vmatpush1.bf16.msra.mxu0 0
    %1306 = vmatprep.subr.bf16.mxu0 0
    %1307 = vmatpush1.bf16.msra.mxu0 0
    %1308 = vmatprep.subr.bf16.mxu0 0
    %1309 = vmatpush1.bf16.msra.mxu0 %v1290
    %1310 = vmatprep.subr.bf16.mxu0 0
    %1311 = vmatpush1.bf16.msra.mxu0 %v1289
    %1312 = vmatprep.subr.bf16.mxu0 0
    %1313 = vmatpush2.bf16.msra.mxu0 0
    %1314 = vmatprep.subr.bf16.mxu0 0
    %1315 = vmatpush2.bf16.msra.mxu0 0
    %1316 = vmatprep.subr.bf16.mxu0 0
    %1317 = vmatpush2.bf16.msra.mxu0 0
    %1318 = vmatprep.subr.bf16.mxu0 0
    %1319 = vmatpush2.bf16.msra.mxu0 0
    %1320 = vmatprep.subr.bf16.mxu0 0
    %1321 = vmatpush2.bf16.msra.mxu0 0
    %1322 = vmatprep.subr.bf16.mxu0 0
    %1323 = vmatpush2.bf16.msra.mxu0 0
    %1324 = vmatprep.subr.bf16.mxu0 0
    %1325 = vmatpush2.bf16.msra.mxu0 0
    %1326 = vmatprep.subr.bf16.mxu0 0
    %1327 = vmatpush2.bf16.msra.mxu0 0
    %1328 = vmatprep.mubr.bf16.mxu0 0
    %1329 = vmatmul.mubr.bf16.gmra.mxu0 %v1294
    %v1330 = vpop.f32.mrf.mxu0
    %v1331 = vadd.f32 0.0, %v1330
    %v1332 = vpop.f32.mrf.mxu0
    %v1333 = vpop.f32.mrf.mxu0
    %v1334 = vadd.f32 0.0, %v1333
    %v1335 = vpop.f32.mrf.mxu0
    %1336 = vdwg.mxu0
    %v1337 = vsel %vm156, %v1331, 0.0
    %1338 = vadd.xlane.f32.xlu0 %v1337
    %v1339 = vpop.xlane.xlu0 %1338
    %v1340 = vsel %vm156, %v1334, 0.0
    %1341 = vadd.xlane.f32.xlu0 %v1340
    %v1342 = vpop.xlane.xlu0 %1341
    %v1343 = vrcp.pop 32.0
    %v1344 = vmul.f32 %v1339, %v1343
    %v1345 = vmul.f32 %v1342, %v1343
    %v1346 = vmul.f32 %v1331, %v1331
    %v1347 = vmul.f32 %v1334, %v1334
    %v1348 = vsel %vm156, %v1346, 0.0
    %1349 = vadd.xlane.f32.xlu0 %v1348
    %v1350 = vpop.xlane.xlu0 %1349
    %v1351 = vsel %vm156, %v1347, 0.0
    %1352 = vadd.xlane.f32.xlu0 %v1351
    %v1353 = vpop.xlane.xlu0 %1352
    %v1354 = vmul.f32 %v1350, %v1343
    %v1355 = vmul.f32 %v1353, %v1343
    %v1356 = vmul.f32 %v1344, %v1344
    %v1357 = vmul.f32 %v1345, %v1345
    %v1358 = vsub.f32 %v1354, %v1356
    %v1359 = vsub.f32 %v1355, %v1357
    %v1360 = vsub.f32 %v1331, %v1344
    %v1361 = vsub.f32 %v1334, %v1345
    %v1362 = vadd.f32 %v1358, 1e-05
    %v1363 = vadd.f32 %v1359, 1e-05
    %v1364 = vrsqrt.pop %v1362
    %v1365 = vrsqrt.pop %v1363
    %v1366 = vmul.f32 %v1360, %v1364
    %v1367 = vmul.f32 %v1361, %v1365
    %v1368 = vld [vmem:[%s7] sm:$0x1]
    %v1370 = vlaneseq
    %v1371 = vshrl.u32 %v1370, 7
    %v1372 = vsub.s32 0, %v1371
    %v1373 = vrot.slane %v1368, %v1372
    %v1375 = vmul.f32 %v1366, %v1373
    %v1376 = vmul.f32 %v1367, %v1373
    %v1377 = vld [vmem:[%s8] sm:$0x1]
    %v1379 = vlaneseq
    %v1380 = vshrl.u32 %v1379, 7
    %v1381 = vsub.s32 0, %v1380
    %v1382 = vrot.slane %v1377, %v1381
    %v1384 = vadd.f32 %v1375, %v1382
    %v1385 = vadd.f32 %v1376, %v1382
    %v1386 = vadd.f32 %v1384, %v137
    %v1387 = vadd.f32 %v1385, %v138
    %v1388 = vsel %vm156, %v1386, 0.0
    %1389 = vadd.xlane.f32.xlu0 %v1388
    %v1390 = vpop.xlane.xlu0 %1389
    %v1391 = vsel %vm156, %v1387, 0.0
    %1392 = vadd.xlane.f32.xlu0 %v1391
    %v1393 = vpop.xlane.xlu0 %1392
    %v1394 = vmul.f32 %v1390, %v1343
    %v1395 = vmul.f32 %v1393, %v1343
    %v1396 = vmul.f32 %v1386, %v1386
    %v1397 = vmul.f32 %v1387, %v1387
    %v1398 = vsel %vm156, %v1396, 0.0
    %1399 = vadd.xlane.f32.xlu0 %v1398
    %v1400 = vpop.xlane.xlu0 %1399
    %v1401 = vsel %vm156, %v1397, 0.0
    %1402 = vadd.xlane.f32.xlu0 %v1401
    %v1403 = vpop.xlane.xlu0 %1402
    %v1404 = vmul.f32 %v1400, %v1343
    %v1405 = vmul.f32 %v1403, %v1343
    %v1406 = vmul.f32 %v1394, %v1394
    %v1407 = vmul.f32 %v1395, %v1395
    %v1408 = vsub.f32 %v1404, %v1406
    %v1409 = vsub.f32 %v1405, %v1407
    %v1410 = vsub.f32 %v1386, %v1394
    %v1411 = vsub.f32 %v1387, %v1395
    %v1412 = vadd.f32 %v1408, 1e-05
    %v1413 = vadd.f32 %v1409, 1e-05
    %v1414 = vrsqrt.pop %v1412
    %v1415 = vrsqrt.pop %v1413
    %v1416 = vmul.f32 %v1410, %v1414
    %v1417 = vmul.f32 %v1411, %v1415
    %v1418 = vld [vmem:[%s9] sm:$0x1]
    %v1420 = vlaneseq
    %v1421 = vshrl.u32 %v1420, 7
    %v1422 = vsub.s32 0, %v1421
    %v1423 = vrot.slane %v1418, %v1422
    %v1425 = vmul.f32 %v1416, %v1423
    %v1426 = vmul.f32 %v1417, %v1423
    %v1427 = vld [vmem:[%s10] sm:$0x1]
    %v1429 = vlaneseq
    %v1430 = vshrl.u32 %v1429, 7
    %v1431 = vsub.s32 0, %v1430
    %v1432 = vrot.slane %v1427, %v1431
    %v1434 = vadd.f32 %v1425, %v1432
    %v1435 = vadd.f32 %v1426, %v1432
    %1436 = vst.msk [vmem:[#allocation15] sm:$0xff] %vm156, %v1434
    %1437 = vst.msk [vmem:[#allocation15 + $0x8] sm:$0xff] %vm156, %v1435
    // Predicated region
    $region74: #{tpu_custom_call.1} parent=1 // pred_check
      _
    $region75: #{tpu_custom_call.1} parent=1 // pred_check_branch
      %1439 = sbr.rel (0) target = $region77
    $region76: #{tpu_custom_call.1} parent=1 // pred_region
      %s1441 = ssub.s32 256, 256
      %1442 = vsyncadd [#allocation5], %s1441
      %s1443 = sshll.u32 [#allocation15], 4
      %s1444 = int_to_ptr.vmem [resolvable:$true] %s1443
      %1449 = dma.vmem_to_hbm [thread:$0]  %s1444, 256, %s11, [#allocation5], 128, 128, 8
    $region77: #{tpu_custom_call.1} parent=1 // pred_fallthru
      _
    // Predicated region
    $region78: #{tpu_custom_call.1} parent=1 // pred_check
      _
    $region79: #{tpu_custom_call.1} parent=1 // pred_check_branch
      %1451 = sbr.rel (0) target = $region81
    $region80: #{tpu_custom_call.1} parent=1 // pred_region
      %1452 = dma.done [#allocation5], 256
    $region81: #{tpu_custom_call.1} parent=1 // pred_fallthru
      _
    %1453 = vsyncpa [#allocation4], 1
    %1454 = vsyncpa [#allocation7], 1
    %1455 = vsyncpa [#allocation10], 1
    %1456 = vsyncpa [#allocation13], 1
    %1457 = vsyncpa [#allocation5], 1

</llo_original>
